<compile_context>
chip_gen: v7x
topology: tpu7x:2x2x1
jax: 0.10.0
libtpu: 0.0.40
codegen_flags: <defaults>
</compile_context>

<pallas_src>
import math

import jax
import jax.numpy as jnp
from jax import lax
from jax.experimental import pallas as pl
from jax.experimental.pallas import tpu as pltpu

BN_EPS = 1e-5


def deepset_kernel(idx_pos_ref, idx_neg_ref, emb_ref, w_pos_ref, w_neg_ref,
                   b_ref, out_ref, counts_ref):
    """One batch tile: stacked one-hot pooled embeddings -> fused head -> sigmoid."""
    tb, s = idx_pos_ref.shape
    n_pad = emb_ref.shape[0]

    # Built once, reused for both branches (JAX does not CSE broadcast_in_dim).
    iota = lax.broadcasted_iota(jnp.int32, (tb, n_pad), 1)

    def counts_of(idx_ref):
        idx = idx_ref[...]                                     # (tb, s) i32
        c = jnp.zeros((tb, n_pad), jnp.float32)
        # Statically unrolled over the (small) set size: keeps the working set
        # at tb*n_pad and avoids the 3D one-hot + sublane reduce entirely.
        for j in range(s):
            c = c + (idx[:, j:j + 1] == iota).astype(jnp.float32)
        return c

    # Stack pos/neg counts along the row axis -> one table matmul with M = 2*tb.
    counts_ref[0:tb, :] = counts_of(idx_pos_ref).astype(counts_ref.dtype)
    counts_ref[tb:2 * tb, :] = counts_of(idx_neg_ref).astype(counts_ref.dtype)

    # sum_{i in set} emb[i] == counts @ emb (duplicates handled by the count);
    # bf16 x bf16 on the MXU, f32 accumulation.
    pooled = jnp.dot(counts_ref[...], emb_ref[...],
                     preferred_element_type=jnp.float32)       # (2*tb, d_pad) f32

    x_pos = pooled[0:tb, :].astype(w_pos_ref.dtype)
    x_neg = pooled[tb:2 * tb, :].astype(w_neg_ref.dtype)

    # Fused head: x_pos @ W0' + x_neg @ (-W1') + (c0' - c1'); no lane concat.
    score = (jnp.dot(x_pos, w_pos_ref[...], preferred_element_type=jnp.float32)
             + jnp.dot(x_neg, w_neg_ref[...], preferred_element_type=jnp.float32)
             + b_ref[...])
    out_ref[...] = jax.nn.sigmoid(score)


def _round_up(x, m):
    return (x + m - 1) // m * m


def _pad2(x, rows, cols):
    return jnp.pad(x, ((0, rows - x.shape[0]), (0, cols - x.shape[1])))


def deepset_forward(idx_pos, idx_neg, p, *, b_tile=128):
    B, S = idx_pos.shape
    N, D = p["emb"].shape
    O = p["w0"].shape[1]

    LANE = 128
    N_pad, D_pad, O_pad = _round_up(N, LANE), _round_up(D, LANE), _round_up(O, LANE)
    B_pad = _round_up(B, b_tile)

    # ---- fold eval-mode BatchNorm1d into the Linear layer (done once, f32) ----
    def fold(g, b, m, v, w, c):
        scale = g / jnp.sqrt(v + BN_EPS)          # (1, D)
        w_f = w * scale.T                         # (D, O) == diag(scale) @ W
        c_f = c + (b - m * scale) @ w             # (1, O)
        return w_f, c_f

    w0f, c0f = fold(p["g0"], p["b0"], p["m0"], p["v0"], p["w0"], p["c0"])
    w1f, c1f = fold(p["g1"], p["b1"], p["m1"], p["v1"], p["w1"], p["c1"])

    # Fused pos/neg head weights (neg branch pre-negated), bf16 MXU operands.
    emb_p = _pad2(p["emb"].astype(jnp.float32), N_pad, D_pad).astype(jnp.bfloat16)
    w_pos = _pad2(w0f, D_pad, O_pad).astype(jnp.bfloat16)
    w_neg = _pad2(-w1f, D_pad, O_pad).astype(jnp.bfloat16)
    bias = _pad2(c0f - c1f, 1, O_pad).astype(jnp.float32)

    idx_pos_p = jnp.pad(idx_pos.astype(jnp.int32), ((0, B_pad - B), (0, 0)))
    idx_neg_p = jnp.pad(idx_neg.astype(jnp.int32), ((0, B_pad - B), (0, 0)))

    out = pl.pallas_call(
        deepset_kernel,
        out_shape=jax.ShapeDtypeStruct((B_pad, O_pad), jnp.float32),
        grid_spec=pltpu.PrefetchScalarGridSpec(
            num_scalar_prefetch=0,
            grid=(B_pad // b_tile,),
            in_specs=[
                pl.BlockSpec((b_tile, S), lambda i: (i, 0)),        # idx_pos tile
                pl.BlockSpec((b_tile, S), lambda i: (i, 0)),        # idx_neg tile
                pl.BlockSpec((N_pad, D_pad), lambda i: (0, 0)),     # embedding table (bf16)
                pl.BlockSpec((D_pad, O_pad), lambda i: (0, 0)),     # W0' (bf16)
                pl.BlockSpec((D_pad, O_pad), lambda i: (0, 0)),     # -W1' (bf16)
                pl.BlockSpec((1, O_pad), lambda i: (0, 0)),         # fused bias (f32)
            ],
            out_specs=pl.BlockSpec((b_tile, O_pad), lambda i: (i, 0)),
            scratch_shapes=[
                pltpu.VMEM((2 * b_tile, N_pad), jnp.bfloat16),      # stacked counts
            ],
        ),
        compiler_params=pltpu.CompilerParams(
            dimension_semantics=("parallel",),
            # Plenty for this footprint; stays well under v7x's 64 MiB VMEM
            # (bf16 table/weights halve the resident bytes), and above the
            # 16 MiB scoped default on v5e.
            vmem_limit_bytes=32 * 1024 * 1024,
        ),
    )(idx_pos_p, idx_neg_p, emb_p, w_pos, w_neg, bias)

    return out[:B, :O]


def init_params(key, num_instances, num_embedding_dim, num_outputs):
    D, O = num_embedding_dim, num_outputs
    ks = jax.random.split(key, 16)
    bound = 1.0 / math.sqrt(D)

    def bn_branch(k0, k1, k2, k3):
        return dict(
            g=jax.random.uniform(k0, (1, D), jnp.float32, 0.5, 1.5),
            b=jax.random.normal(k1, (1, D), jnp.float32) * 0.1,
            m=jax.random.normal(k2, (1, D), jnp.float32) * 0.1,
            v=jax.random.uniform(k3, (1, D), jnp.float32, 0.5, 1.5),
        )

    bn0 = bn_branch(*ks[0:4])
    bn1 = bn_branch(*ks[4:8])
    return {
        "emb": jax.random.normal(ks[8], (num_instances, D), jnp.float32),
        "g0": bn0["g"], "b0": bn0["b"], "m0": bn0["m"], "v0": bn0["v"],
        "g1": bn1["g"], "b1": bn1["b"], "m1": bn1["m"], "v1": bn1["v"],
        # Linear weights stored transposed: (D, O)
        "w0": jax.random.uniform(ks[9], (D, O), jnp.float32, -bound, bound),
        "c0": jax.random.uniform(ks[10], (1, O), jnp.float32, -bound, bound),
        "w1": jax.random.uniform(ks[11], (D, O), jnp.float32, -bound, bound),
        "c1": jax.random.uniform(ks[12], (1, O), jnp.float32, -bound, bound),
    }


def deepset_reference(idx_pos, idx_neg, p):
    def branch(idx, g, b, m, v, w, c):
        x = jnp.sum(p["emb"][idx], axis=1)                  # (B, D)
        xn = (x - m) / jnp.sqrt(v + BN_EPS) * g + b         # BN eval mode
        return xn @ w + c                                   # (B, O)

    s_pos = branch(idx_pos, p["g0"], p["b0"], p["m0"], p["v0"], p["w0"], p["c0"])
    s_neg = branch(idx_neg, p["g1"], p["b1"], p["m1"], p["v1"], p["w1"], p["c1"])
    return jax.nn.sigmoid(s_pos - s_neg)


if __name__ == "__main__":
    B, S = 2, 8                      # batch of 2 sets, 8 instances per set
    num_instances = 32
    num_embedding_dim = 32
    num_outputs = 4

    key = jax.random.PRNGKey(0)
    k_par, k_pos, k_neg = jax.random.split(key, 3)

    params = init_params(k_par, num_instances, num_embedding_dim, num_outputs)
    xpos = jax.random.randint(k_pos, (B, S), 0, num_instances, dtype=jnp.int32)
    xneg = jax.random.randint(k_neg, (B, S), 0, num_instances, dtype=jnp.int32)

    out = deepset_forward(xpos, xneg, params)
    out = jax.block_until_ready(out)

    ref = deepset_reference(xpos, xneg, params)
    assert out.shape == (B, num_outputs)
    # bf16 table/weights on the MXU -> loosened tolerance (f32 accumulation).
    assert jnp.allclose(out, ref, atol=2e-2, rtol=2e-2), (out, ref)

    print("KERNEL_OK")
</pallas_src>

<mosaic_0001>
module attributes {stable_mosaic.version = 11 : i64} {
  func.func @deepset_kernel(%arg0: i32, %arg1: memref<128x8xi32, #tpu.memory_space<vmem>>, %arg2: memref<128x8xi32, #tpu.memory_space<vmem>>, %arg3: memref<128x128xbf16, #tpu.memory_space<vmem>>, %arg4: memref<128x128xbf16, #tpu.memory_space<vmem>>, %arg5: memref<128x128xbf16, #tpu.memory_space<vmem>>, %arg6: memref<1x128xf32, #tpu.memory_space<vmem>>, %arg7: memref<128x128xf32, #tpu.memory_space<vmem>>, %arg8: memref<256x128xbf16, #tpu.memory_space<vmem>>) attributes {dimension_semantics = [#tpu.dimension_semantics<parallel>], iteration_bounds = array<i64: 1>, scalar_prefetch = 0 : i64, scratch_operands = 1 : i64, tpu.core_type = #tpu.core_type<tc>, window_params = [{transform_indices = @transform_0, window_bounds = array<i64: 128, 8>}, {transform_indices = @transform_1, window_bounds = array<i64: 128, 8>}, {pipeline_mode = #tpu.pipeline_mode<synchronous>, transform_indices = @transform_2, window_bounds = array<i64: 128, 128>}, {pipeline_mode = #tpu.pipeline_mode<synchronous>, transform_indices = @transform_3, window_bounds = array<i64: 128, 128>}, {pipeline_mode = #tpu.pipeline_mode<synchronous>, transform_indices = @transform_4, window_bounds = array<i64: 128, 128>}, {pipeline_mode = #tpu.pipeline_mode<synchronous>, transform_indices = @transform_5, window_bounds = array<i64: 1, 128>}, {transform_indices = @transform_6, window_bounds = array<i64: 128, 128>}]} {
    %0 = tpu.iota {dimensions = array<i32: 1>} : vector<128x128xi32>
    %c0 = arith.constant 0 : index
    %c0_0 = arith.constant 0 : index
    %1 = vector.load %arg1[%c0, %c0_0] : memref<128x8xi32, #tpu.memory_space<vmem>>, vector<128x8xi32>
    %cst = arith.constant 0.000000e+00 : f32
    %2 = vector.broadcast %cst : f32 to vector<128x128xf32>
    %3 = vector.extract_strided_slice %1 {offsets = [0, 0], sizes = [128, 1], strides = [1, 1]} : vector<128x8xi32> to vector<128x1xi32>
    %4 = vector.broadcast %3 : vector<128x1xi32> to vector<128x128xi32>
    %5 = arith.cmpi eq, %4, %0 : vector<128x128xi32>
    %6 = arith.extui %5 : vector<128x128xi1> to vector<128x128xi32>
    %7 = arith.sitofp %6 : vector<128x128xi32> to vector<128x128xf32>
    %8 = arith.addf %2, %7 : vector<128x128xf32>
    %9 = vector.extract_strided_slice %1 {offsets = [0, 1], sizes = [128, 1], strides = [1, 1]} : vector<128x8xi32> to vector<128x1xi32>
    %10 = vector.broadcast %9 : vector<128x1xi32> to vector<128x128xi32>
    %11 = arith.cmpi eq, %10, %0 : vector<128x128xi32>
    %12 = arith.extui %11 : vector<128x128xi1> to vector<128x128xi32>
    %13 = arith.sitofp %12 : vector<128x128xi32> to vector<128x128xf32>
    %14 = arith.addf %8, %13 : vector<128x128xf32>
    %15 = vector.extract_strided_slice %1 {offsets = [0, 2], sizes = [128, 1], strides = [1, 1]} : vector<128x8xi32> to vector<128x1xi32>
    %16 = vector.broadcast %15 : vector<128x1xi32> to vector<128x128xi32>
    %17 = arith.cmpi eq, %16, %0 : vector<128x128xi32>
    %18 = arith.extui %17 : vector<128x128xi1> to vector<128x128xi32>
    %19 = arith.sitofp %18 : vector<128x128xi32> to vector<128x128xf32>
    %20 = arith.addf %14, %19 : vector<128x128xf32>
    %21 = vector.extract_strided_slice %1 {offsets = [0, 3], sizes = [128, 1], strides = [1, 1]} : vector<128x8xi32> to vector<128x1xi32>
    %22 = vector.broadcast %21 : vector<128x1xi32> to vector<128x128xi32>
    %23 = arith.cmpi eq, %22, %0 : vector<128x128xi32>
    %24 = arith.extui %23 : vector<128x128xi1> to vector<128x128xi32>
    %25 = arith.sitofp %24 : vector<128x128xi32> to vector<128x128xf32>
    %26 = arith.addf %20, %25 : vector<128x128xf32>
    %27 = vector.extract_strided_slice %1 {offsets = [0, 4], sizes = [128, 1], strides = [1, 1]} : vector<128x8xi32> to vector<128x1xi32>
    %28 = vector.broadcast %27 : vector<128x1xi32> to vector<128x128xi32>
    %29 = arith.cmpi eq, %28, %0 : vector<128x128xi32>
    %30 = arith.extui %29 : vector<128x128xi1> to vector<128x128xi32>
    %31 = arith.sitofp %30 : vector<128x128xi32> to vector<128x128xf32>
    %32 = arith.addf %26, %31 : vector<128x128xf32>
    %33 = vector.extract_strided_slice %1 {offsets = [0, 5], sizes = [128, 1], strides = [1, 1]} : vector<128x8xi32> to vector<128x1xi32>
    %34 = vector.broadcast %33 : vector<128x1xi32> to vector<128x128xi32>
    %35 = arith.cmpi eq, %34, %0 : vector<128x128xi32>
    %36 = arith.extui %35 : vector<128x128xi1> to vector<128x128xi32>
    %37 = arith.sitofp %36 : vector<128x128xi32> to vector<128x128xf32>
    %38 = arith.addf %32, %37 : vector<128x128xf32>
    %39 = vector.extract_strided_slice %1 {offsets = [0, 6], sizes = [128, 1], strides = [1, 1]} : vector<128x8xi32> to vector<128x1xi32>
    %40 = vector.broadcast %39 : vector<128x1xi32> to vector<128x128xi32>
    %41 = arith.cmpi eq, %40, %0 : vector<128x128xi32>
    %42 = arith.extui %41 : vector<128x128xi1> to vector<128x128xi32>
    %43 = arith.sitofp %42 : vector<128x128xi32> to vector<128x128xf32>
    %44 = arith.addf %38, %43 : vector<128x128xf32>
    %45 = vector.extract_strided_slice %1 {offsets = [0, 7], sizes = [128, 1], strides = [1, 1]} : vector<128x8xi32> to vector<128x1xi32>
    %46 = vector.broadcast %45 : vector<128x1xi32> to vector<128x128xi32>
    %47 = arith.cmpi eq, %46, %0 : vector<128x128xi32>
    %48 = arith.extui %47 : vector<128x128xi1> to vector<128x128xi32>
    %49 = arith.sitofp %48 : vector<128x128xi32> to vector<128x128xf32>
    %50 = arith.addf %44, %49 : vector<128x128xf32>
    %51 = arith.truncf %50 : vector<128x128xf32> to vector<128x128xbf16>
    %c0_1 = arith.constant 0 : index
    %c0_2 = arith.constant 0 : index
    %52 = vector.load %arg8[%c0_1, %c0_2] : memref<256x128xbf16, #tpu.memory_space<vmem>>, vector<128x128xbf16>
    tpu.vector_store %arg8[%c0_1, %c0_2], %51 {strides = array<i32>} : memref<256x128xbf16, #tpu.memory_space<vmem>>, vector<128x128xbf16>,
    %c0_3 = arith.constant 0 : index
    %c0_4 = arith.constant 0 : index
    %53 = vector.load %arg2[%c0_3, %c0_4] : memref<128x8xi32, #tpu.memory_space<vmem>>, vector<128x8xi32>
    %cst_5 = arith.constant 0.000000e+00 : f32
    %54 = vector.broadcast %cst_5 : f32 to vector<128x128xf32>
    %55 = vector.extract_strided_slice %53 {offsets = [0, 0], sizes = [128, 1], strides = [1, 1]} : vector<128x8xi32> to vector<128x1xi32>
    %56 = vector.broadcast %55 : vector<128x1xi32> to vector<128x128xi32>
    %57 = arith.cmpi eq, %56, %0 : vector<128x128xi32>
    %58 = arith.extui %57 : vector<128x128xi1> to vector<128x128xi32>
    %59 = arith.sitofp %58 : vector<128x128xi32> to vector<128x128xf32>
    %60 = arith.addf %54, %59 : vector<128x128xf32>
    %61 = vector.extract_strided_slice %53 {offsets = [0, 1], sizes = [128, 1], strides = [1, 1]} : vector<128x8xi32> to vector<128x1xi32>
    %62 = vector.broadcast %61 : vector<128x1xi32> to vector<128x128xi32>
    %63 = arith.cmpi eq, %62, %0 : vector<128x128xi32>
    %64 = arith.extui %63 : vector<128x128xi1> to vector<128x128xi32>
    %65 = arith.sitofp %64 : vector<128x128xi32> to vector<128x128xf32>
    %66 = arith.addf %60, %65 : vector<128x128xf32>
    %67 = vector.extract_strided_slice %53 {offsets = [0, 2], sizes = [128, 1], strides = [1, 1]} : vector<128x8xi32> to vector<128x1xi32>
    %68 = vector.broadcast %67 : vector<128x1xi32> to vector<128x128xi32>
    %69 = arith.cmpi eq, %68, %0 : vector<128x128xi32>
    %70 = arith.extui %69 : vector<128x128xi1> to vector<128x128xi32>
    %71 = arith.sitofp %70 : vector<128x128xi32> to vector<128x128xf32>
    %72 = arith.addf %66, %71 : vector<128x128xf32>
    %73 = vector.extract_strided_slice %53 {offsets = [0, 3], sizes = [128, 1], strides = [1, 1]} : vector<128x8xi32> to vector<128x1xi32>
    %74 = vector.broadcast %73 : vector<128x1xi32> to vector<128x128xi32>
    %75 = arith.cmpi eq, %74, %0 : vector<128x128xi32>
    %76 = arith.extui %75 : vector<128x128xi1> to vector<128x128xi32>
    %77 = arith.sitofp %76 : vector<128x128xi32> to vector<128x128xf32>
    %78 = arith.addf %72, %77 : vector<128x128xf32>
    %79 = vector.extract_strided_slice %53 {offsets = [0, 4], sizes = [128, 1], strides = [1, 1]} : vector<128x8xi32> to vector<128x1xi32>
    %80 = vector.broadcast %79 : vector<128x1xi32> to vector<128x128xi32>
    %81 = arith.cmpi eq, %80, %0 : vector<128x128xi32>
    %82 = arith.extui %81 : vector<128x128xi1> to vector<128x128xi32>
    %83 = arith.sitofp %82 : vector<128x128xi32> to vector<128x128xf32>
    %84 = arith.addf %78, %83 : vector<128x128xf32>
    %85 = vector.extract_strided_slice %53 {offsets = [0, 5], sizes = [128, 1], strides = [1, 1]} : vector<128x8xi32> to vector<128x1xi32>
    %86 = vector.broadcast %85 : vector<128x1xi32> to vector<128x128xi32>
    %87 = arith.cmpi eq, %86, %0 : vector<128x128xi32>
    %88 = arith.extui %87 : vector<128x128xi1> to vector<128x128xi32>
    %89 = arith.sitofp %88 : vector<128x128xi32> to vector<128x128xf32>
    %90 = arith.addf %84, %89 : vector<128x128xf32>
    %91 = vector.extract_strided_slice %53 {offsets = [0, 6], sizes = [128, 1], strides = [1, 1]} : vector<128x8xi32> to vector<128x1xi32>
    %92 = vector.broadcast %91 : vector<128x1xi32> to vector<128x128xi32>
    %93 = arith.cmpi eq, %92, %0 : vector<128x128xi32>
    %94 = arith.extui %93 : vector<128x128xi1> to vector<128x128xi32>
    %95 = arith.sitofp %94 : vector<128x128xi32> to vector<128x128xf32>
    %96 = arith.addf %90, %95 : vector<128x128xf32>
    %97 = vector.extract_strided_slice %53 {offsets = [0, 7], sizes = [128, 1], strides = [1, 1]} : vector<128x8xi32> to vector<128x1xi32>
    %98 = vector.broadcast %97 : vector<128x1xi32> to vector<128x128xi32>
    %99 = arith.cmpi eq, %98, %0 : vector<128x128xi32>
    %100 = arith.extui %99 : vector<128x128xi1> to vector<128x128xi32>
    %101 = arith.sitofp %100 : vector<128x128xi32> to vector<128x128xf32>
    %102 = arith.addf %96, %101 : vector<128x128xf32>
    %103 = arith.truncf %102 : vector<128x128xf32> to vector<128x128xbf16>
    %c128 = arith.constant 128 : index
    %c0_6 = arith.constant 0 : index
    %104 = vector.load %arg8[%c128, %c0_6] : memref<256x128xbf16, #tpu.memory_space<vmem>>, vector<128x128xbf16>
    tpu.vector_store %arg8[%c128, %c0_6], %103 {strides = array<i32>} : memref<256x128xbf16, #tpu.memory_space<vmem>>, vector<128x128xbf16>,
    %c0_7 = arith.constant 0 : index
    %c0_8 = arith.constant 0 : index
    %105 = vector.load %arg8[%c0_7, %c0_8] : memref<256x128xbf16, #tpu.memory_space<vmem>>, vector<256x128xbf16>
    %c0_9 = arith.constant 0 : index
    %c0_10 = arith.constant 0 : index
    %106 = vector.load %arg3[%c0_9, %c0_10] : memref<128x128xbf16, #tpu.memory_space<vmem>>, vector<128x128xbf16>
    %cst_11 = arith.constant dense<0.000000e+00> : vector<256x128xf32>
    %107 = tpu.matmul %105, %106, %cst_11 {dimension_numbers = #tpu.dot_dimension_numbers<[1], [0], [0], [1], [0, 0, 1, 1], [], []>} : vector<256x128xbf16>, vector<128x128xbf16>, vector<256x128xf32> -> vector<256x128xf32>
    %108 = vector.extract_strided_slice %107 {offsets = [0, 0], sizes = [128, 128], strides = [1, 1]} : vector<256x128xf32> to vector<128x128xf32>
    %109 = arith.truncf %108 : vector<128x128xf32> to vector<128x128xbf16>
    %110 = vector.extract_strided_slice %107 {offsets = [128, 0], sizes = [128, 128], strides = [1, 1]} : vector<256x128xf32> to vector<128x128xf32>
    %111 = arith.truncf %110 : vector<128x128xf32> to vector<128x128xbf16>
    %c0_12 = arith.constant 0 : index
    %c0_13 = arith.constant 0 : index
    %112 = vector.load %arg4[%c0_12, %c0_13] : memref<128x128xbf16, #tpu.memory_space<vmem>>, vector<128x128xbf16>
    %cst_14 = arith.constant dense<0.000000e+00> : vector<128x128xf32>
    %113 = tpu.matmul %109, %112, %cst_14 {dimension_numbers = #tpu.dot_dimension_numbers<[1], [0], [0], [1], [0, 0, 1, 1], [], []>} : vector<128x128xbf16>, vector<128x128xbf16>, vector<128x128xf32> -> vector<128x128xf32>
    %c0_15 = arith.constant 0 : index
    %c0_16 = arith.constant 0 : index
    %114 = vector.load %arg5[%c0_15, %c0_16] : memref<128x128xbf16, #tpu.memory_space<vmem>>, vector<128x128xbf16>
    %cst_17 = arith.constant dense<0.000000e+00> : vector<128x128xf32>
    %115 = tpu.matmul %111, %114, %cst_17 {dimension_numbers = #tpu.dot_dimension_numbers<[1], [0], [0], [1], [0, 0, 1, 1], [], []>} : vector<128x128xbf16>, vector<128x128xbf16>, vector<128x128xf32> -> vector<128x128xf32>
    %116 = arith.addf %113, %115 : vector<128x128xf32>
    %c0_18 = arith.constant 0 : index
    %c0_19 = arith.constant 0 : index
    %117 = vector.load %arg6[%c0_18, %c0_19] : memref<1x128xf32, #tpu.memory_space<vmem>>, vector<1x128xf32>
    %118 = vector.broadcast %117 : vector<1x128xf32> to vector<128x128xf32>
    %119 = arith.addf %116, %118 : vector<128x128xf32>
    %120 = arith.negf %119 : vector<128x128xf32>
    %121 = math.exp %120 : vector<128x128xf32>
    %cst_20 = arith.constant 1.000000e+00 : f32
    %122 = vector.broadcast %cst_20 : f32 to vector<128x128xf32>
    %123 = arith.addf %122, %121 : vector<128x128xf32>
    %124 = arith.divf %122, %123 : vector<128x128xf32>
    %c0_21 = arith.constant 0 : index
    %c0_22 = arith.constant 0 : index
    %125 = vector.load %arg7[%c0_21, %c0_22] : memref<128x128xf32, #tpu.memory_space<vmem>>, vector<128x128xf32>
    tpu.vector_store %arg7[%c0_21, %c0_22], %124 {strides = array<i32>} : memref<128x128xf32, #tpu.memory_space<vmem>>, vector<128x128xf32>,
    return
  }
  func.func @transform_0(%arg0: i32) -> (i32, i32) {
    %c0_i32 = arith.constant 0 : i32
    %c0_i32_0 = arith.constant 0 : i32
    return %arg0, %c0_i32 : i32, i32
  }
  func.func @transform_1(%arg0: i32) -> (i32, i32) {
    %c0_i32 = arith.constant 0 : i32
    %c0_i32_0 = arith.constant 0 : i32
    return %arg0, %c0_i32 : i32, i32
  }
  func.func @transform_2(%arg0: i32) -> (i32, i32) {
    %c0_i32 = arith.constant 0 : i32
    %c0_i32_0 = arith.constant 0 : i32
    %c0_i32_1 = arith.constant 0 : i32
    return %c0_i32, %c0_i32_0 : i32, i32
  }
  func.func @transform_3(%arg0: i32) -> (i32, i32) {
    %c0_i32 = arith.constant 0 : i32
    %c0_i32_0 = arith.constant 0 : i32
    %c0_i32_1 = arith.constant 0 : i32
    return %c0_i32, %c0_i32_0 : i32, i32
  }
  func.func @transform_4(%arg0: i32) -> (i32, i32) {
    %c0_i32 = arith.constant 0 : i32
    %c0_i32_0 = arith.constant 0 : i32
    %c0_i32_1 = arith.constant 0 : i32
    return %c0_i32, %c0_i32_0 : i32, i32
  }
  func.func @transform_5(%arg0: i32) -> (i32, i32) {
    %c0_i32 = arith.constant 0 : i32
    %c0_i32_0 = arith.constant 0 : i32
    %c0_i32_1 = arith.constant 0 : i32
    return %c0_i32, %c0_i32_0 : i32, i32
  }
  func.func @transform_6(%arg0: i32) -> (i32, i32) {
    %c0_i32 = arith.constant 0 : i32
    %c0_i32_0 = arith.constant 0 : i32
    return %arg0, %c0_i32 : i32, i32
  }
}

</mosaic_0001>

<llo_original>
// kernel: tpu_custom_call.1
$region0: #{tpu_custom_call.1}
  #allocation0 [shape = 'u32[]', space=smem, size = 0x4, offset = 0x4, fixed_abs, tag = 'smem constant byte address 0x4 - core index']
  #allocation1 [shape = 'u32[144,128]{1,0:T(1,128)}', space=vmem, size = 0x12000, scoped, tag = 'internal scratch']
  #allocation2 [shape = 'bf16[256,128]{1,0:T(16,128)(2,1)}', space=vmem, size = 0x10000, scoped, tag = 'scratch operand']
  %s0 = inlined_call_operand.vmem [shape: s32[128,8], index: 0, kind: input, shape index: {}]
  %s1 = inlined_call_operand.vmem [shape: s32[128,8], index: 1, kind: input, shape index: {}]
  %s2 = inlined_call_operand.vmem [shape: bf16[128,128], index: 2, kind: input, shape index: {}]
  %s3 = inlined_call_operand.vmem [shape: bf16[128,128], index: 3, kind: input, shape index: {}]
  %s4 = inlined_call_operand.vmem [shape: bf16[128,128], index: 4, kind: input, shape index: {}]
  %s5 = inlined_call_operand.vmem [shape: f32[1,128], index: 5, kind: input, shape index: {}]
  %s6 = inlined_call_operand.hbm [shape: f32[128,128], index: 6, kind: output, shape index: {}]
  %s7 = sld [smem:[#allocation0]]
  $region34: #{tpu_custom_call.1} parent=0
    _
  %s9 = ssub.s32 1, %s7
  %s10 = scalar_select 0, %s9, %s7
  $region1: #{tpu_custom_call.1} parent=0
    #allocation3 [shape = 'u8[65536]{0}', space=vmem, size = 0x10000, scoped, tag = 'output window, operand 0, single buffered']
    #allocation4 [shape = 's32[1]{0}', space=sflag, size = 0x4, scoped, tag = 'scoped memory for tpu_custom_call.1']
    %11 = vsyncpa [#allocation4], 0
    // Predicated region
    $region2: #{tpu_custom_call.1} parent=1 // pred_check
      _
    $region3: #{tpu_custom_call.1} parent=1 // pred_check_branch
      %13 = sbr.rel (0) target = $region5
    $region4: #{tpu_custom_call.1} parent=1 // pred_region
      _
    $region5: #{tpu_custom_call.1} parent=1 // pred_fallthru
      _
    // Predicated region
    $region6: #{tpu_custom_call.1} parent=1 // pred_check
      _
    $region7: #{tpu_custom_call.1} parent=1 // pred_check_branch
      %15 = sbr.rel (0) target = $region9
    $region8: #{tpu_custom_call.1} parent=1 // pred_region
      _
    $region9: #{tpu_custom_call.1} parent=1 // pred_fallthru
      _
    // Predicated region
    $region10: #{tpu_custom_call.1} parent=1 // pred_check
      _
    $region11: #{tpu_custom_call.1} parent=1 // pred_check_branch
      %17 = sbr.rel (0) target = $region13
    $region12: #{tpu_custom_call.1} parent=1 // pred_region
      _
    $region13: #{tpu_custom_call.1} parent=1 // pred_fallthru
      _
    // Predicated region
    $region14: #{tpu_custom_call.1} parent=1 // pred_check
      _
    $region15: #{tpu_custom_call.1} parent=1 // pred_check_branch
      %19 = sbr.rel (0) target = $region17
    $region16: #{tpu_custom_call.1} parent=1 // pred_region
      _
    $region17: #{tpu_custom_call.1} parent=1 // pred_fallthru
      _
    // Predicated region
    $region18: #{tpu_custom_call.1} parent=1 // pred_check
      _
    $region19: #{tpu_custom_call.1} parent=1 // pred_check_branch
      %21 = sbr.rel (0) target = $region21
    $region20: #{tpu_custom_call.1} parent=1 // pred_region
      _
    $region21: #{tpu_custom_call.1} parent=1 // pred_fallthru
      _
    // Predicated region
    $region22: #{tpu_custom_call.1} parent=1 // pred_check
      _
    $region23: #{tpu_custom_call.1} parent=1 // pred_check_branch
      %23 = sbr.rel (0) target = $region25
    $region24: #{tpu_custom_call.1} parent=1 // pred_region
      _
    $region25: #{tpu_custom_call.1} parent=1 // pred_fallthru
      _
    %v25 = vlaneseq
    %v26 = vand.u32 %v25, 127
    %v27 = vld [vmem:[%s0] sm:$0xff]
    %v28 = vld [vmem:[%s0 + $0x8] sm:$0xff]
    %v29 = vld [vmem:[%s0 + $0x10] sm:$0xff]
    %v30 = vld [vmem:[%s0 + $0x18] sm:$0xff]
    %v31 = vld [vmem:[%s0 + $0x20] sm:$0xff]
    %v32 = vld [vmem:[%s0 + $0x28] sm:$0xff]
    %v33 = vld [vmem:[%s0 + $0x30] sm:$0xff]
    %v34 = vld [vmem:[%s0 + $0x38] sm:$0xff]
    %v35 = vld [vmem:[%s0 + $0x40] sm:$0xff]
    %v36 = vld [vmem:[%s0 + $0x48] sm:$0xff]
    %v37 = vld [vmem:[%s0 + $0x50] sm:$0xff]
    %v38 = vld [vmem:[%s0 + $0x58] sm:$0xff]
    %v39 = vld [vmem:[%s0 + $0x60] sm:$0xff]
    %v40 = vld [vmem:[%s0 + $0x68] sm:$0xff]
    %v41 = vld [vmem:[%s0 + $0x70] sm:$0xff]
    %v42 = vld [vmem:[%s0 + $0x78] sm:$0xff]
    %43 = vset.pattern.permute.xlu0 0
    %44 = vperm.xlu0 %43, %v27
    %v45 = vpop.permute.xlu0 %44
    %46 = vset.pattern.permute.xlu0 0
    %47 = vperm.xlu0 %46, %v28
    %v48 = vpop.permute.xlu0 %47
    %49 = vset.pattern.permute.xlu0 0
    %50 = vperm.xlu0 %49, %v29
    %v51 = vpop.permute.xlu0 %50
    %52 = vset.pattern.permute.xlu0 0
    %53 = vperm.xlu0 %52, %v30
    %v54 = vpop.permute.xlu0 %53
    %55 = vset.pattern.permute.xlu0 0
    %56 = vperm.xlu0 %55, %v31
    %v57 = vpop.permute.xlu0 %56
    %58 = vset.pattern.permute.xlu0 0
    %59 = vperm.xlu0 %58, %v32
    %v60 = vpop.permute.xlu0 %59
    %61 = vset.pattern.permute.xlu0 0
    %62 = vperm.xlu0 %61, %v33
    %v63 = vpop.permute.xlu0 %62
    %64 = vset.pattern.permute.xlu0 0
    %65 = vperm.xlu0 %64, %v34
    %v66 = vpop.permute.xlu0 %65
    %67 = vset.pattern.permute.xlu0 0
    %68 = vperm.xlu0 %67, %v35
    %v69 = vpop.permute.xlu0 %68
    %70 = vset.pattern.permute.xlu0 0
    %71 = vperm.xlu0 %70, %v36
    %v72 = vpop.permute.xlu0 %71
    %73 = vset.pattern.permute.xlu0 0
    %74 = vperm.xlu0 %73, %v37
    %v75 = vpop.permute.xlu0 %74
    %76 = vset.pattern.permute.xlu0 0
    %77 = vperm.xlu0 %76, %v38
    %v78 = vpop.permute.xlu0 %77
    %79 = vset.pattern.permute.xlu0 0
    %80 = vperm.xlu0 %79, %v39
    %v81 = vpop.permute.xlu0 %80
    %82 = vset.pattern.permute.xlu0 0
    %83 = vperm.xlu0 %82, %v40
    %v84 = vpop.permute.xlu0 %83
    %85 = vset.pattern.permute.xlu0 0
    %86 = vperm.xlu0 %85, %v41
    %v87 = vpop.permute.xlu0 %86
    %88 = vset.pattern.permute.xlu0 0
    %89 = vperm.xlu0 %88, %v42
    %v90 = vpop.permute.xlu0 %89
    %vm91 = vcmp.eq.s32.totalorder %v45, %v26
    %vm92 = vcmp.eq.s32.totalorder %v48, %v26
    %vm93 = vcmp.eq.s32.totalorder %v51, %v26
    %vm94 = vcmp.eq.s32.totalorder %v54, %v26
    %vm95 = vcmp.eq.s32.totalorder %v57, %v26
    %vm96 = vcmp.eq.s32.totalorder %v60, %v26
    %vm97 = vcmp.eq.s32.totalorder %v63, %v26
    %vm98 = vcmp.eq.s32.totalorder %v66, %v26
    %vm99 = vcmp.eq.s32.totalorder %v69, %v26
    %vm100 = vcmp.eq.s32.totalorder %v72, %v26
    %vm101 = vcmp.eq.s32.totalorder %v75, %v26
    %vm102 = vcmp.eq.s32.totalorder %v78, %v26
    %vm103 = vcmp.eq.s32.totalorder %v81, %v26
    %vm104 = vcmp.eq.s32.totalorder %v84, %v26
    %vm105 = vcmp.eq.s32.totalorder %v87, %v26
    %vm106 = vcmp.eq.s32.totalorder %v90, %v26
    %v107 = vsel %vm91, 1, 0
    %v108 = vsel %vm92, 1, 0
    %v109 = vsel %vm93, 1, 0
    %v110 = vsel %vm94, 1, 0
    %v111 = vsel %vm95, 1, 0
    %v112 = vsel %vm96, 1, 0
    %v113 = vsel %vm97, 1, 0
    %v114 = vsel %vm98, 1, 0
    %v115 = vsel %vm99, 1, 0
    %v116 = vsel %vm100, 1, 0
    %v117 = vsel %vm101, 1, 0
    %v118 = vsel %vm102, 1, 0
    %v119 = vsel %vm103, 1, 0
    %v120 = vsel %vm104, 1, 0
    %v121 = vsel %vm105, 1, 0
    %v122 = vsel %vm106, 1, 0
    %v123 = vcvt.s32.f32 %v107
    %v124 = vcvt.s32.f32 %v108
    %v125 = vcvt.s32.f32 %v109
    %v126 = vcvt.s32.f32 %v110
    %v127 = vcvt.s32.f32 %v111
    %v128 = vcvt.s32.f32 %v112
    %v129 = vcvt.s32.f32 %v113
    %v130 = vcvt.s32.f32 %v114
    %v131 = vcvt.s32.f32 %v115
    %v132 = vcvt.s32.f32 %v116
    %v133 = vcvt.s32.f32 %v117
    %v134 = vcvt.s32.f32 %v118
    %v135 = vcvt.s32.f32 %v119
    %v136 = vcvt.s32.f32 %v120
    %v137 = vcvt.s32.f32 %v121
    %v138 = vcvt.s32.f32 %v122
    %v139 = vadd.f32 %v123, 0.0
    %v140 = vadd.f32 %v124, 0.0
    %v141 = vadd.f32 %v125, 0.0
    %v142 = vadd.f32 %v126, 0.0
    %v143 = vadd.f32 %v127, 0.0
    %v144 = vadd.f32 %v128, 0.0
    %v145 = vadd.f32 %v129, 0.0
    %v146 = vadd.f32 %v130, 0.0
    %v147 = vadd.f32 %v131, 0.0
    %v148 = vadd.f32 %v132, 0.0
    %v149 = vadd.f32 %v133, 0.0
    %v150 = vadd.f32 %v134, 0.0
    %v151 = vadd.f32 %v135, 0.0
    %v152 = vadd.f32 %v136, 0.0
    %v153 = vadd.f32 %v137, 0.0
    %v154 = vadd.f32 %v138, 0.0
    %155 = vset.pattern.permute.xlu0 1
    %156 = vperm.xlu0 %155, %v27
    %v157 = vpop.permute.xlu0 %156
    %158 = vset.pattern.permute.xlu0 1
    %159 = vperm.xlu0 %158, %v28
    %v160 = vpop.permute.xlu0 %159
    %161 = vset.pattern.permute.xlu0 1
    %162 = vperm.xlu0 %161, %v29
    %v163 = vpop.permute.xlu0 %162
    %164 = vset.pattern.permute.xlu0 1
    %165 = vperm.xlu0 %164, %v30
    %v166 = vpop.permute.xlu0 %165
    %167 = vset.pattern.permute.xlu0 1
    %168 = vperm.xlu0 %167, %v31
    %v169 = vpop.permute.xlu0 %168
    %170 = vset.pattern.permute.xlu0 1
    %171 = vperm.xlu0 %170, %v32
    %v172 = vpop.permute.xlu0 %171
    %173 = vset.pattern.permute.xlu0 1
    %174 = vperm.xlu0 %173, %v33
    %v175 = vpop.permute.xlu0 %174
    %176 = vset.pattern.permute.xlu0 1
    %177 = vperm.xlu0 %176, %v34
    %v178 = vpop.permute.xlu0 %177
    %179 = vset.pattern.permute.xlu0 1
    %180 = vperm.xlu0 %179, %v35
    %v181 = vpop.permute.xlu0 %180
    %182 = vset.pattern.permute.xlu0 1
    %183 = vperm.xlu0 %182, %v36
    %v184 = vpop.permute.xlu0 %183
    %185 = vset.pattern.permute.xlu0 1
    %186 = vperm.xlu0 %185, %v37
    %v187 = vpop.permute.xlu0 %186
    %188 = vset.pattern.permute.xlu0 1
    %189 = vperm.xlu0 %188, %v38
    %v190 = vpop.permute.xlu0 %189
    %191 = vset.pattern.permute.xlu0 1
    %192 = vperm.xlu0 %191, %v39
    %v193 = vpop.permute.xlu0 %192
    %194 = vset.pattern.permute.xlu0 1
    %195 = vperm.xlu0 %194, %v40
    %v196 = vpop.permute.xlu0 %195
    %197 = vset.pattern.permute.xlu0 1
    %198 = vperm.xlu0 %197, %v41
    %v199 = vpop.permute.xlu0 %198
    %200 = vset.pattern.permute.xlu0 1
    %201 = vperm.xlu0 %200, %v42
    %v202 = vpop.permute.xlu0 %201
    %vm203 = vcmp.eq.s32.totalorder %v157, %v26
    %vm204 = vcmp.eq.s32.totalorder %v160, %v26
    %vm205 = vcmp.eq.s32.totalorder %v163, %v26
    %vm206 = vcmp.eq.s32.totalorder %v166, %v26
    %vm207 = vcmp.eq.s32.totalorder %v169, %v26
    %vm208 = vcmp.eq.s32.totalorder %v172, %v26
    %vm209 = vcmp.eq.s32.totalorder %v175, %v26
    %vm210 = vcmp.eq.s32.totalorder %v178, %v26
    %vm211 = vcmp.eq.s32.totalorder %v181, %v26
    %vm212 = vcmp.eq.s32.totalorder %v184, %v26
    %vm213 = vcmp.eq.s32.totalorder %v187, %v26
    %vm214 = vcmp.eq.s32.totalorder %v190, %v26
    %vm215 = vcmp.eq.s32.totalorder %v193, %v26
    %vm216 = vcmp.eq.s32.totalorder %v196, %v26
    %vm217 = vcmp.eq.s32.totalorder %v199, %v26
    %vm218 = vcmp.eq.s32.totalorder %v202, %v26
    %v219 = vsel %vm203, 1, 0
    %v220 = vsel %vm204, 1, 0
    %v221 = vsel %vm205, 1, 0
    %v222 = vsel %vm206, 1, 0
    %v223 = vsel %vm207, 1, 0
    %v224 = vsel %vm208, 1, 0
    %v225 = vsel %vm209, 1, 0
    %v226 = vsel %vm210, 1, 0
    %v227 = vsel %vm211, 1, 0
    %v228 = vsel %vm212, 1, 0
    %v229 = vsel %vm213, 1, 0
    %v230 = vsel %vm214, 1, 0
    %v231 = vsel %vm215, 1, 0
    %v232 = vsel %vm216, 1, 0
    %v233 = vsel %vm217, 1, 0
    %v234 = vsel %vm218, 1, 0
    %v235 = vcvt.s32.f32 %v219
    %v236 = vcvt.s32.f32 %v220
    %v237 = vcvt.s32.f32 %v221
    %v238 = vcvt.s32.f32 %v222
    %v239 = vcvt.s32.f32 %v223
    %v240 = vcvt.s32.f32 %v224
    %v241 = vcvt.s32.f32 %v225
    %v242 = vcvt.s32.f32 %v226
    %v243 = vcvt.s32.f32 %v227
    %v244 = vcvt.s32.f32 %v228
    %v245 = vcvt.s32.f32 %v229
    %v246 = vcvt.s32.f32 %v230
    %v247 = vcvt.s32.f32 %v231
    %v248 = vcvt.s32.f32 %v232
    %v249 = vcvt.s32.f32 %v233
    %v250 = vcvt.s32.f32 %v234
    %v251 = vadd.f32 %v139, %v235
    %v252 = vadd.f32 %v140, %v236
    %v253 = vadd.f32 %v141, %v237
    %v254 = vadd.f32 %v142, %v238
    %v255 = vadd.f32 %v143, %v239
    %v256 = vadd.f32 %v144, %v240
    %v257 = vadd.f32 %v145, %v241
    %v258 = vadd.f32 %v146, %v242
    %v259 = vadd.f32 %v147, %v243
    %v260 = vadd.f32 %v148, %v244
    %v261 = vadd.f32 %v149, %v245
    %v262 = vadd.f32 %v150, %v246
    %v263 = vadd.f32 %v151, %v247
    %v264 = vadd.f32 %v152, %v248
    %v265 = vadd.f32 %v153, %v249
    %v266 = vadd.f32 %v154, %v250
    %267 = vset.pattern.permute.xlu0 2
    %268 = vperm.xlu0 %267, %v27
    %v269 = vpop.permute.xlu0 %268
    %270 = vset.pattern.permute.xlu0 2
    %271 = vperm.xlu0 %270, %v28
    %v272 = vpop.permute.xlu0 %271
    %273 = vset.pattern.permute.xlu0 2
    %274 = vperm.xlu0 %273, %v29
    %v275 = vpop.permute.xlu0 %274
    %276 = vset.pattern.permute.xlu0 2
    %277 = vperm.xlu0 %276, %v30
    %v278 = vpop.permute.xlu0 %277
    %279 = vset.pattern.permute.xlu0 2
    %280 = vperm.xlu0 %279, %v31
    %v281 = vpop.permute.xlu0 %280
    %282 = vset.pattern.permute.xlu0 2
    %283 = vperm.xlu0 %282, %v32
    %v284 = vpop.permute.xlu0 %283
    %285 = vset.pattern.permute.xlu0 2
    %286 = vperm.xlu0 %285, %v33
    %v287 = vpop.permute.xlu0 %286
    %288 = vset.pattern.permute.xlu0 2
    %289 = vperm.xlu0 %288, %v34
    %v290 = vpop.permute.xlu0 %289
    %291 = vset.pattern.permute.xlu0 2
    %292 = vperm.xlu0 %291, %v35
    %v293 = vpop.permute.xlu0 %292
    %294 = vset.pattern.permute.xlu0 2
    %295 = vperm.xlu0 %294, %v36
    %v296 = vpop.permute.xlu0 %295
    %297 = vset.pattern.permute.xlu0 2
    %298 = vperm.xlu0 %297, %v37
    %v299 = vpop.permute.xlu0 %298
    %300 = vset.pattern.permute.xlu0 2
    %301 = vperm.xlu0 %300, %v38
    %v302 = vpop.permute.xlu0 %301
    %303 = vset.pattern.permute.xlu0 2
    %304 = vperm.xlu0 %303, %v39
    %v305 = vpop.permute.xlu0 %304
    %306 = vset.pattern.permute.xlu0 2
    %307 = vperm.xlu0 %306, %v40
    %v308 = vpop.permute.xlu0 %307
    %309 = vset.pattern.permute.xlu0 2
    %310 = vperm.xlu0 %309, %v41
    %v311 = vpop.permute.xlu0 %310
    %312 = vset.pattern.permute.xlu0 2
    %313 = vperm.xlu0 %312, %v42
    %v314 = vpop.permute.xlu0 %313
    %vm315 = vcmp.eq.s32.totalorder %v269, %v26
    %vm316 = vcmp.eq.s32.totalorder %v272, %v26
    %vm317 = vcmp.eq.s32.totalorder %v275, %v26
    %vm318 = vcmp.eq.s32.totalorder %v278, %v26
    %vm319 = vcmp.eq.s32.totalorder %v281, %v26
    %vm320 = vcmp.eq.s32.totalorder %v284, %v26
    %vm321 = vcmp.eq.s32.totalorder %v287, %v26
    %vm322 = vcmp.eq.s32.totalorder %v290, %v26
    %vm323 = vcmp.eq.s32.totalorder %v293, %v26
    %vm324 = vcmp.eq.s32.totalorder %v296, %v26
    %vm325 = vcmp.eq.s32.totalorder %v299, %v26
    %vm326 = vcmp.eq.s32.totalorder %v302, %v26
    %vm327 = vcmp.eq.s32.totalorder %v305, %v26
    %vm328 = vcmp.eq.s32.totalorder %v308, %v26
    %vm329 = vcmp.eq.s32.totalorder %v311, %v26
    %vm330 = vcmp.eq.s32.totalorder %v314, %v26
    %v331 = vsel %vm315, 1, 0
    %v332 = vsel %vm316, 1, 0
    %v333 = vsel %vm317, 1, 0
    %v334 = vsel %vm318, 1, 0
    %v335 = vsel %vm319, 1, 0
    %v336 = vsel %vm320, 1, 0
    %v337 = vsel %vm321, 1, 0
    %v338 = vsel %vm322, 1, 0
    %v339 = vsel %vm323, 1, 0
    %v340 = vsel %vm324, 1, 0
    %v341 = vsel %vm325, 1, 0
    %v342 = vsel %vm326, 1, 0
    %v343 = vsel %vm327, 1, 0
    %v344 = vsel %vm328, 1, 0
    %v345 = vsel %vm329, 1, 0
    %v346 = vsel %vm330, 1, 0
    %v347 = vcvt.s32.f32 %v331
    %v348 = vcvt.s32.f32 %v332
    %v349 = vcvt.s32.f32 %v333
    %v350 = vcvt.s32.f32 %v334
    %v351 = vcvt.s32.f32 %v335
    %v352 = vcvt.s32.f32 %v336
    %v353 = vcvt.s32.f32 %v337
    %v354 = vcvt.s32.f32 %v338
    %v355 = vcvt.s32.f32 %v339
    %v356 = vcvt.s32.f32 %v340
    %v357 = vcvt.s32.f32 %v341
    %v358 = vcvt.s32.f32 %v342
    %v359 = vcvt.s32.f32 %v343
    %v360 = vcvt.s32.f32 %v344
    %v361 = vcvt.s32.f32 %v345
    %v362 = vcvt.s32.f32 %v346
    %v363 = vadd.f32 %v251, %v347
    %v364 = vadd.f32 %v252, %v348
    %v365 = vadd.f32 %v253, %v349
    %v366 = vadd.f32 %v254, %v350
    %v367 = vadd.f32 %v255, %v351
    %v368 = vadd.f32 %v256, %v352
    %v369 = vadd.f32 %v257, %v353
    %v370 = vadd.f32 %v258, %v354
    %v371 = vadd.f32 %v259, %v355
    %v372 = vadd.f32 %v260, %v356
    %v373 = vadd.f32 %v261, %v357
    %v374 = vadd.f32 %v262, %v358
    %v375 = vadd.f32 %v263, %v359
    %v376 = vadd.f32 %v264, %v360
    %v377 = vadd.f32 %v265, %v361
    %v378 = vadd.f32 %v266, %v362
    %379 = vset.pattern.permute.xlu0 3
    %380 = vperm.xlu0 %379, %v27
    %v381 = vpop.permute.xlu0 %380
    %382 = vset.pattern.permute.xlu0 3
    %383 = vperm.xlu0 %382, %v28
    %v384 = vpop.permute.xlu0 %383
    %385 = vset.pattern.permute.xlu0 3
    %386 = vperm.xlu0 %385, %v29
    %v387 = vpop.permute.xlu0 %386
    %388 = vset.pattern.permute.xlu0 3
    %389 = vperm.xlu0 %388, %v30
    %v390 = vpop.permute.xlu0 %389
    %391 = vset.pattern.permute.xlu0 3
    %392 = vperm.xlu0 %391, %v31
    %v393 = vpop.permute.xlu0 %392
    %394 = vset.pattern.permute.xlu0 3
    %395 = vperm.xlu0 %394, %v32
    %v396 = vpop.permute.xlu0 %395
    %397 = vset.pattern.permute.xlu0 3
    %398 = vperm.xlu0 %397, %v33
    %v399 = vpop.permute.xlu0 %398
    %400 = vset.pattern.permute.xlu0 3
    %401 = vperm.xlu0 %400, %v34
    %v402 = vpop.permute.xlu0 %401
    %403 = vset.pattern.permute.xlu0 3
    %404 = vperm.xlu0 %403, %v35
    %v405 = vpop.permute.xlu0 %404
    %406 = vset.pattern.permute.xlu0 3
    %407 = vperm.xlu0 %406, %v36
    %v408 = vpop.permute.xlu0 %407
    %409 = vset.pattern.permute.xlu0 3
    %410 = vperm.xlu0 %409, %v37
    %v411 = vpop.permute.xlu0 %410
    %412 = vset.pattern.permute.xlu0 3
    %413 = vperm.xlu0 %412, %v38
    %v414 = vpop.permute.xlu0 %413
    %415 = vset.pattern.permute.xlu0 3
    %416 = vperm.xlu0 %415, %v39
    %v417 = vpop.permute.xlu0 %416
    %418 = vset.pattern.permute.xlu0 3
    %419 = vperm.xlu0 %418, %v40
    %v420 = vpop.permute.xlu0 %419
    %421 = vset.pattern.permute.xlu0 3
    %422 = vperm.xlu0 %421, %v41
    %v423 = vpop.permute.xlu0 %422
    %424 = vset.pattern.permute.xlu0 3
    %425 = vperm.xlu0 %424, %v42
    %v426 = vpop.permute.xlu0 %425
    %vm427 = vcmp.eq.s32.totalorder %v381, %v26
    %vm428 = vcmp.eq.s32.totalorder %v384, %v26
    %vm429 = vcmp.eq.s32.totalorder %v387, %v26
    %vm430 = vcmp.eq.s32.totalorder %v390, %v26
    %vm431 = vcmp.eq.s32.totalorder %v393, %v26
    %vm432 = vcmp.eq.s32.totalorder %v396, %v26
    %vm433 = vcmp.eq.s32.totalorder %v399, %v26
    %vm434 = vcmp.eq.s32.totalorder %v402, %v26
    %vm435 = vcmp.eq.s32.totalorder %v405, %v26
    %vm436 = vcmp.eq.s32.totalorder %v408, %v26
    %vm437 = vcmp.eq.s32.totalorder %v411, %v26
    %vm438 = vcmp.eq.s32.totalorder %v414, %v26
    %vm439 = vcmp.eq.s32.totalorder %v417, %v26
    %vm440 = vcmp.eq.s32.totalorder %v420, %v26
    %vm441 = vcmp.eq.s32.totalorder %v423, %v26
    %vm442 = vcmp.eq.s32.totalorder %v426, %v26
    %v443 = vsel %vm427, 1, 0
    %v444 = vsel %vm428, 1, 0
    %v445 = vsel %vm429, 1, 0
    %v446 = vsel %vm430, 1, 0
    %v447 = vsel %vm431, 1, 0
    %v448 = vsel %vm432, 1, 0
    %v449 = vsel %vm433, 1, 0
    %v450 = vsel %vm434, 1, 0
    %v451 = vsel %vm435, 1, 0
    %v452 = vsel %vm436, 1, 0
    %v453 = vsel %vm437, 1, 0
    %v454 = vsel %vm438, 1, 0
    %v455 = vsel %vm439, 1, 0
    %v456 = vsel %vm440, 1, 0
    %v457 = vsel %vm441, 1, 0
    %v458 = vsel %vm442, 1, 0
    %v459 = vcvt.s32.f32 %v443
    %v460 = vcvt.s32.f32 %v444
    %v461 = vcvt.s32.f32 %v445
    %v462 = vcvt.s32.f32 %v446
    %v463 = vcvt.s32.f32 %v447
    %v464 = vcvt.s32.f32 %v448
    %v465 = vcvt.s32.f32 %v449
    %v466 = vcvt.s32.f32 %v450
    %v467 = vcvt.s32.f32 %v451
    %v468 = vcvt.s32.f32 %v452
    %v469 = vcvt.s32.f32 %v453
    %v470 = vcvt.s32.f32 %v454
    %v471 = vcvt.s32.f32 %v455
    %v472 = vcvt.s32.f32 %v456
    %v473 = vcvt.s32.f32 %v457
    %v474 = vcvt.s32.f32 %v458
    %v475 = vadd.f32 %v363, %v459
    %v476 = vadd.f32 %v364, %v460
    %v477 = vadd.f32 %v365, %v461
    %v478 = vadd.f32 %v366, %v462
    %v479 = vadd.f32 %v367, %v463
    %v480 = vadd.f32 %v368, %v464
    %v481 = vadd.f32 %v369, %v465
    %v482 = vadd.f32 %v370, %v466
    %v483 = vadd.f32 %v371, %v467
    %v484 = vadd.f32 %v372, %v468
    %v485 = vadd.f32 %v373, %v469
    %v486 = vadd.f32 %v374, %v470
    %v487 = vadd.f32 %v375, %v471
    %v488 = vadd.f32 %v376, %v472
    %v489 = vadd.f32 %v377, %v473
    %v490 = vadd.f32 %v378, %v474
    %491 = vset.pattern.permute.xlu0 4
    %492 = vperm.xlu0 %491, %v27
    %v493 = vpop.permute.xlu0 %492
    %494 = vset.pattern.permute.xlu0 4
    %495 = vperm.xlu0 %494, %v28
    %v496 = vpop.permute.xlu0 %495
    %497 = vset.pattern.permute.xlu0 4
    %498 = vperm.xlu0 %497, %v29
    %v499 = vpop.permute.xlu0 %498
    %500 = vset.pattern.permute.xlu0 4
    %501 = vperm.xlu0 %500, %v30
    %v502 = vpop.permute.xlu0 %501
    %503 = vset.pattern.permute.xlu0 4
    %504 = vperm.xlu0 %503, %v31
    %v505 = vpop.permute.xlu0 %504
    %506 = vset.pattern.permute.xlu0 4
    %507 = vperm.xlu0 %506, %v32
    %v508 = vpop.permute.xlu0 %507
    %509 = vset.pattern.permute.xlu0 4
    %510 = vperm.xlu0 %509, %v33
    %v511 = vpop.permute.xlu0 %510
    %512 = vset.pattern.permute.xlu0 4
    %513 = vperm.xlu0 %512, %v34
    %v514 = vpop.permute.xlu0 %513
    %515 = vset.pattern.permute.xlu0 4
    %516 = vperm.xlu0 %515, %v35
    %v517 = vpop.permute.xlu0 %516
    %518 = vset.pattern.permute.xlu0 4
    %519 = vperm.xlu0 %518, %v36
    %v520 = vpop.permute.xlu0 %519
    %521 = vset.pattern.permute.xlu0 4
    %522 = vperm.xlu0 %521, %v37
    %v523 = vpop.permute.xlu0 %522
    %524 = vset.pattern.permute.xlu0 4
    %525 = vperm.xlu0 %524, %v38
    %v526 = vpop.permute.xlu0 %525
    %527 = vset.pattern.permute.xlu0 4
    %528 = vperm.xlu0 %527, %v39
    %v529 = vpop.permute.xlu0 %528
    %530 = vset.pattern.permute.xlu0 4
    %531 = vperm.xlu0 %530, %v40
    %v532 = vpop.permute.xlu0 %531
    %533 = vset.pattern.permute.xlu0 4
    %534 = vperm.xlu0 %533, %v41
    %v535 = vpop.permute.xlu0 %534
    %536 = vset.pattern.permute.xlu0 4
    %537 = vperm.xlu0 %536, %v42
    %v538 = vpop.permute.xlu0 %537
    %vm539 = vcmp.eq.s32.totalorder %v493, %v26
    %vm540 = vcmp.eq.s32.totalorder %v496, %v26
    %vm541 = vcmp.eq.s32.totalorder %v499, %v26
    %vm542 = vcmp.eq.s32.totalorder %v502, %v26
    %vm543 = vcmp.eq.s32.totalorder %v505, %v26
    %vm544 = vcmp.eq.s32.totalorder %v508, %v26
    %vm545 = vcmp.eq.s32.totalorder %v511, %v26
    %vm546 = vcmp.eq.s32.totalorder %v514, %v26
    %vm547 = vcmp.eq.s32.totalorder %v517, %v26
    %vm548 = vcmp.eq.s32.totalorder %v520, %v26
    %vm549 = vcmp.eq.s32.totalorder %v523, %v26
    %vm550 = vcmp.eq.s32.totalorder %v526, %v26
    %vm551 = vcmp.eq.s32.totalorder %v529, %v26
    %vm552 = vcmp.eq.s32.totalorder %v532, %v26
    %vm553 = vcmp.eq.s32.totalorder %v535, %v26
    %vm554 = vcmp.eq.s32.totalorder %v538, %v26
    %v555 = vsel %vm539, 1, 0
    %v556 = vsel %vm540, 1, 0
    %v557 = vsel %vm541, 1, 0
    %v558 = vsel %vm542, 1, 0
    %v559 = vsel %vm543, 1, 0
    %v560 = vsel %vm544, 1, 0
    %v561 = vsel %vm545, 1, 0
    %v562 = vsel %vm546, 1, 0
    %v563 = vsel %vm547, 1, 0
    %v564 = vsel %vm548, 1, 0
    %v565 = vsel %vm549, 1, 0
    %v566 = vsel %vm550, 1, 0
    %v567 = vsel %vm551, 1, 0
    %v568 = vsel %vm552, 1, 0
    %v569 = vsel %vm553, 1, 0
    %v570 = vsel %vm554, 1, 0
    %v571 = vcvt.s32.f32 %v555
    %v572 = vcvt.s32.f32 %v556
    %v573 = vcvt.s32.f32 %v557
    %v574 = vcvt.s32.f32 %v558
    %v575 = vcvt.s32.f32 %v559
    %v576 = vcvt.s32.f32 %v560
    %v577 = vcvt.s32.f32 %v561
    %v578 = vcvt.s32.f32 %v562
    %v579 = vcvt.s32.f32 %v563
    %v580 = vcvt.s32.f32 %v564
    %v581 = vcvt.s32.f32 %v565
    %v582 = vcvt.s32.f32 %v566
    %v583 = vcvt.s32.f32 %v567
    %v584 = vcvt.s32.f32 %v568
    %v585 = vcvt.s32.f32 %v569
    %v586 = vcvt.s32.f32 %v570
    %v587 = vadd.f32 %v475, %v571
    %v588 = vadd.f32 %v476, %v572
    %v589 = vadd.f32 %v477, %v573
    %v590 = vadd.f32 %v478, %v574
    %v591 = vadd.f32 %v479, %v575
    %v592 = vadd.f32 %v480, %v576
    %v593 = vadd.f32 %v481, %v577
    %v594 = vadd.f32 %v482, %v578
    %v595 = vadd.f32 %v483, %v579
    %v596 = vadd.f32 %v484, %v580
    %v597 = vadd.f32 %v485, %v581
    %v598 = vadd.f32 %v486, %v582
    %v599 = vadd.f32 %v487, %v583
    %v600 = vadd.f32 %v488, %v584
    %v601 = vadd.f32 %v489, %v585
    %v602 = vadd.f32 %v490, %v586
    %603 = vset.pattern.permute.xlu0 5
    %604 = vperm.xlu0 %603, %v27
    %v605 = vpop.permute.xlu0 %604
    %606 = vset.pattern.permute.xlu0 5
    %607 = vperm.xlu0 %606, %v28
    %v608 = vpop.permute.xlu0 %607
    %609 = vset.pattern.permute.xlu0 5
    %610 = vperm.xlu0 %609, %v29
    %v611 = vpop.permute.xlu0 %610
    %612 = vset.pattern.permute.xlu0 5
    %613 = vperm.xlu0 %612, %v30
    %v614 = vpop.permute.xlu0 %613
    %615 = vset.pattern.permute.xlu0 5
    %616 = vperm.xlu0 %615, %v31
    %v617 = vpop.permute.xlu0 %616
    %618 = vset.pattern.permute.xlu0 5
    %619 = vperm.xlu0 %618, %v32
    %v620 = vpop.permute.xlu0 %619
    %621 = vset.pattern.permute.xlu0 5
    %622 = vperm.xlu0 %621, %v33
    %v623 = vpop.permute.xlu0 %622
    %624 = vset.pattern.permute.xlu0 5
    %625 = vperm.xlu0 %624, %v34
    %v626 = vpop.permute.xlu0 %625
    %627 = vset.pattern.permute.xlu0 5
    %628 = vperm.xlu0 %627, %v35
    %v629 = vpop.permute.xlu0 %628
    %630 = vset.pattern.permute.xlu0 5
    %631 = vperm.xlu0 %630, %v36
    %v632 = vpop.permute.xlu0 %631
    %633 = vset.pattern.permute.xlu0 5
    %634 = vperm.xlu0 %633, %v37
    %v635 = vpop.permute.xlu0 %634
    %636 = vset.pattern.permute.xlu0 5
    %637 = vperm.xlu0 %636, %v38
    %v638 = vpop.permute.xlu0 %637
    %639 = vset.pattern.permute.xlu0 5
    %640 = vperm.xlu0 %639, %v39
    %v641 = vpop.permute.xlu0 %640
    %642 = vset.pattern.permute.xlu0 5
    %643 = vperm.xlu0 %642, %v40
    %v644 = vpop.permute.xlu0 %643
    %645 = vset.pattern.permute.xlu0 5
    %646 = vperm.xlu0 %645, %v41
    %v647 = vpop.permute.xlu0 %646
    %648 = vset.pattern.permute.xlu0 5
    %649 = vperm.xlu0 %648, %v42
    %v650 = vpop.permute.xlu0 %649
    %vm651 = vcmp.eq.s32.totalorder %v605, %v26
    %vm652 = vcmp.eq.s32.totalorder %v608, %v26
    %vm653 = vcmp.eq.s32.totalorder %v611, %v26
    %vm654 = vcmp.eq.s32.totalorder %v614, %v26
    %vm655 = vcmp.eq.s32.totalorder %v617, %v26
    %vm656 = vcmp.eq.s32.totalorder %v620, %v26
    %vm657 = vcmp.eq.s32.totalorder %v623, %v26
    %vm658 = vcmp.eq.s32.totalorder %v626, %v26
    %vm659 = vcmp.eq.s32.totalorder %v629, %v26
    %vm660 = vcmp.eq.s32.totalorder %v632, %v26
    %vm661 = vcmp.eq.s32.totalorder %v635, %v26
    %vm662 = vcmp.eq.s32.totalorder %v638, %v26
    %vm663 = vcmp.eq.s32.totalorder %v641, %v26
    %vm664 = vcmp.eq.s32.totalorder %v644, %v26
    %vm665 = vcmp.eq.s32.totalorder %v647, %v26
    %vm666 = vcmp.eq.s32.totalorder %v650, %v26
    %v667 = vsel %vm651, 1, 0
    %v668 = vsel %vm652, 1, 0
    %v669 = vsel %vm653, 1, 0
    %v670 = vsel %vm654, 1, 0
    %v671 = vsel %vm655, 1, 0
    %v672 = vsel %vm656, 1, 0
    %v673 = vsel %vm657, 1, 0
    %v674 = vsel %vm658, 1, 0
    %v675 = vsel %vm659, 1, 0
    %v676 = vsel %vm660, 1, 0
    %v677 = vsel %vm661, 1, 0
    %v678 = vsel %vm662, 1, 0
    %v679 = vsel %vm663, 1, 0
    %v680 = vsel %vm664, 1, 0
    %v681 = vsel %vm665, 1, 0
    %v682 = vsel %vm666, 1, 0
    %v683 = vcvt.s32.f32 %v667
    %v684 = vcvt.s32.f32 %v668
    %v685 = vcvt.s32.f32 %v669
    %v686 = vcvt.s32.f32 %v670
    %v687 = vcvt.s32.f32 %v671
    %v688 = vcvt.s32.f32 %v672
    %v689 = vcvt.s32.f32 %v673
    %v690 = vcvt.s32.f32 %v674
    %v691 = vcvt.s32.f32 %v675
    %v692 = vcvt.s32.f32 %v676
    %v693 = vcvt.s32.f32 %v677
    %v694 = vcvt.s32.f32 %v678
    %v695 = vcvt.s32.f32 %v679
    %v696 = vcvt.s32.f32 %v680
    %v697 = vcvt.s32.f32 %v681
    %v698 = vcvt.s32.f32 %v682
    %v699 = vadd.f32 %v587, %v683
    %v700 = vadd.f32 %v588, %v684
    %v701 = vadd.f32 %v589, %v685
    %v702 = vadd.f32 %v590, %v686
    %v703 = vadd.f32 %v591, %v687
    %v704 = vadd.f32 %v592, %v688
    %v705 = vadd.f32 %v593, %v689
    %v706 = vadd.f32 %v594, %v690
    %v707 = vadd.f32 %v595, %v691
    %v708 = vadd.f32 %v596, %v692
    %v709 = vadd.f32 %v597, %v693
    %v710 = vadd.f32 %v598, %v694
    %v711 = vadd.f32 %v599, %v695
    %v712 = vadd.f32 %v600, %v696
    %v713 = vadd.f32 %v601, %v697
    %v714 = vadd.f32 %v602, %v698
    %715 = vset.pattern.permute.xlu0 6
    %716 = vperm.xlu0 %715, %v27
    %v717 = vpop.permute.xlu0 %716
    %718 = vset.pattern.permute.xlu0 6
    %719 = vperm.xlu0 %718, %v28
    %v720 = vpop.permute.xlu0 %719
    %721 = vset.pattern.permute.xlu0 6
    %722 = vperm.xlu0 %721, %v29
    %v723 = vpop.permute.xlu0 %722
    %724 = vset.pattern.permute.xlu0 6
    %725 = vperm.xlu0 %724, %v30
    %v726 = vpop.permute.xlu0 %725
    %727 = vset.pattern.permute.xlu0 6
    %728 = vperm.xlu0 %727, %v31
    %v729 = vpop.permute.xlu0 %728
    %730 = vset.pattern.permute.xlu0 6
    %731 = vperm.xlu0 %730, %v32
    %v732 = vpop.permute.xlu0 %731
    %733 = vset.pattern.permute.xlu0 6
    %734 = vperm.xlu0 %733, %v33
    %v735 = vpop.permute.xlu0 %734
    %736 = vset.pattern.permute.xlu0 6
    %737 = vperm.xlu0 %736, %v34
    %v738 = vpop.permute.xlu0 %737
    %739 = vset.pattern.permute.xlu0 6
    %740 = vperm.xlu0 %739, %v35
    %v741 = vpop.permute.xlu0 %740
    %742 = vset.pattern.permute.xlu0 6
    %743 = vperm.xlu0 %742, %v36
    %v744 = vpop.permute.xlu0 %743
    %745 = vset.pattern.permute.xlu0 6
    %746 = vperm.xlu0 %745, %v37
    %v747 = vpop.permute.xlu0 %746
    %748 = vset.pattern.permute.xlu0 6
    %749 = vperm.xlu0 %748, %v38
    %v750 = vpop.permute.xlu0 %749
    %751 = vset.pattern.permute.xlu0 6
    %752 = vperm.xlu0 %751, %v39
    %v753 = vpop.permute.xlu0 %752
    %754 = vset.pattern.permute.xlu0 6
    %755 = vperm.xlu0 %754, %v40
    %v756 = vpop.permute.xlu0 %755
    %757 = vset.pattern.permute.xlu0 6
    %758 = vperm.xlu0 %757, %v41
    %v759 = vpop.permute.xlu0 %758
    %760 = vset.pattern.permute.xlu0 6
    %761 = vperm.xlu0 %760, %v42
    %v762 = vpop.permute.xlu0 %761
    %vm763 = vcmp.eq.s32.totalorder %v717, %v26
    %vm764 = vcmp.eq.s32.totalorder %v720, %v26
    %vm765 = vcmp.eq.s32.totalorder %v723, %v26
    %vm766 = vcmp.eq.s32.totalorder %v726, %v26
    %vm767 = vcmp.eq.s32.totalorder %v729, %v26
    %vm768 = vcmp.eq.s32.totalorder %v732, %v26
    %vm769 = vcmp.eq.s32.totalorder %v735, %v26
    %vm770 = vcmp.eq.s32.totalorder %v738, %v26
    %vm771 = vcmp.eq.s32.totalorder %v741, %v26
    %vm772 = vcmp.eq.s32.totalorder %v744, %v26
    %vm773 = vcmp.eq.s32.totalorder %v747, %v26
    %vm774 = vcmp.eq.s32.totalorder %v750, %v26
    %vm775 = vcmp.eq.s32.totalorder %v753, %v26
    %vm776 = vcmp.eq.s32.totalorder %v756, %v26
    %vm777 = vcmp.eq.s32.totalorder %v759, %v26
    %vm778 = vcmp.eq.s32.totalorder %v762, %v26
    %v779 = vsel %vm763, 1, 0
    %v780 = vsel %vm764, 1, 0
    %v781 = vsel %vm765, 1, 0
    %v782 = vsel %vm766, 1, 0
    %v783 = vsel %vm767, 1, 0
    %v784 = vsel %vm768, 1, 0
    %v785 = vsel %vm769, 1, 0
    %v786 = vsel %vm770, 1, 0
    %v787 = vsel %vm771, 1, 0
    %v788 = vsel %vm772, 1, 0
    %v789 = vsel %vm773, 1, 0
    %v790 = vsel %vm774, 1, 0
    %v791 = vsel %vm775, 1, 0
    %v792 = vsel %vm776, 1, 0
    %v793 = vsel %vm777, 1, 0
    %v794 = vsel %vm778, 1, 0
    %v795 = vcvt.s32.f32 %v779
    %v796 = vcvt.s32.f32 %v780
    %v797 = vcvt.s32.f32 %v781
    %v798 = vcvt.s32.f32 %v782
    %v799 = vcvt.s32.f32 %v783
    %v800 = vcvt.s32.f32 %v784
    %v801 = vcvt.s32.f32 %v785
    %v802 = vcvt.s32.f32 %v786
    %v803 = vcvt.s32.f32 %v787
    %v804 = vcvt.s32.f32 %v788
    %v805 = vcvt.s32.f32 %v789
    %v806 = vcvt.s32.f32 %v790
    %v807 = vcvt.s32.f32 %v791
    %v808 = vcvt.s32.f32 %v792
    %v809 = vcvt.s32.f32 %v793
    %v810 = vcvt.s32.f32 %v794
    %v811 = vadd.f32 %v699, %v795
    %v812 = vadd.f32 %v700, %v796
    %v813 = vadd.f32 %v701, %v797
    %v814 = vadd.f32 %v702, %v798
    %v815 = vadd.f32 %v703, %v799
    %v816 = vadd.f32 %v704, %v800
    %v817 = vadd.f32 %v705, %v801
    %v818 = vadd.f32 %v706, %v802
    %v819 = vadd.f32 %v707, %v803
    %v820 = vadd.f32 %v708, %v804
    %v821 = vadd.f32 %v709, %v805
    %v822 = vadd.f32 %v710, %v806
    %v823 = vadd.f32 %v711, %v807
    %v824 = vadd.f32 %v712, %v808
    %v825 = vadd.f32 %v713, %v809
    %v826 = vadd.f32 %v714, %v810
    %827 = vset.pattern.permute.xlu0 7
    %828 = vperm.xlu0 %827, %v27
    %v829 = vpop.permute.xlu0 %828
    %830 = vset.pattern.permute.xlu0 7
    %831 = vperm.xlu0 %830, %v28
    %v832 = vpop.permute.xlu0 %831
    %833 = vset.pattern.permute.xlu0 7
    %834 = vperm.xlu0 %833, %v29
    %v835 = vpop.permute.xlu0 %834
    %836 = vset.pattern.permute.xlu0 7
    %837 = vperm.xlu0 %836, %v30
    %v838 = vpop.permute.xlu0 %837
    %839 = vset.pattern.permute.xlu0 7
    %840 = vperm.xlu0 %839, %v31
    %v841 = vpop.permute.xlu0 %840
    %842 = vset.pattern.permute.xlu0 7
    %843 = vperm.xlu0 %842, %v32
    %v844 = vpop.permute.xlu0 %843
    %845 = vset.pattern.permute.xlu0 7
    %846 = vperm.xlu0 %845, %v33
    %v847 = vpop.permute.xlu0 %846
    %848 = vset.pattern.permute.xlu0 7
    %849 = vperm.xlu0 %848, %v34
    %v850 = vpop.permute.xlu0 %849
    %851 = vset.pattern.permute.xlu0 7
    %852 = vperm.xlu0 %851, %v35
    %v853 = vpop.permute.xlu0 %852
    %854 = vset.pattern.permute.xlu0 7
    %855 = vperm.xlu0 %854, %v36
    %v856 = vpop.permute.xlu0 %855
    %857 = vset.pattern.permute.xlu0 7
    %858 = vperm.xlu0 %857, %v37
    %v859 = vpop.permute.xlu0 %858
    %860 = vset.pattern.permute.xlu0 7
    %861 = vperm.xlu0 %860, %v38
    %v862 = vpop.permute.xlu0 %861
    %863 = vset.pattern.permute.xlu0 7
    %864 = vperm.xlu0 %863, %v39
    %v865 = vpop.permute.xlu0 %864
    %866 = vset.pattern.permute.xlu0 7
    %867 = vperm.xlu0 %866, %v40
    %v868 = vpop.permute.xlu0 %867
    %869 = vset.pattern.permute.xlu0 7
    %870 = vperm.xlu0 %869, %v41
    %v871 = vpop.permute.xlu0 %870
    %872 = vset.pattern.permute.xlu0 7
    %873 = vperm.xlu0 %872, %v42
    %v874 = vpop.permute.xlu0 %873
    %vm875 = vcmp.eq.s32.totalorder %v829, %v26
    %vm876 = vcmp.eq.s32.totalorder %v832, %v26
    %vm877 = vcmp.eq.s32.totalorder %v835, %v26
    %vm878 = vcmp.eq.s32.totalorder %v838, %v26
    %vm879 = vcmp.eq.s32.totalorder %v841, %v26
    %vm880 = vcmp.eq.s32.totalorder %v844, %v26
    %vm881 = vcmp.eq.s32.totalorder %v847, %v26
    %vm882 = vcmp.eq.s32.totalorder %v850, %v26
    %vm883 = vcmp.eq.s32.totalorder %v853, %v26
    %vm884 = vcmp.eq.s32.totalorder %v856, %v26
    %vm885 = vcmp.eq.s32.totalorder %v859, %v26
    %vm886 = vcmp.eq.s32.totalorder %v862, %v26
    %vm887 = vcmp.eq.s32.totalorder %v865, %v26
    %vm888 = vcmp.eq.s32.totalorder %v868, %v26
    %vm889 = vcmp.eq.s32.totalorder %v871, %v26
    %vm890 = vcmp.eq.s32.totalorder %v874, %v26
    %v891 = vsel %vm875, 1, 0
    %v892 = vsel %vm876, 1, 0
    %v893 = vsel %vm877, 1, 0
    %v894 = vsel %vm878, 1, 0
    %v895 = vsel %vm879, 1, 0
    %v896 = vsel %vm880, 1, 0
    %v897 = vsel %vm881, 1, 0
    %v898 = vsel %vm882, 1, 0
    %v899 = vsel %vm883, 1, 0
    %v900 = vsel %vm884, 1, 0
    %v901 = vsel %vm885, 1, 0
    %v902 = vsel %vm886, 1, 0
    %v903 = vsel %vm887, 1, 0
    %v904 = vsel %vm888, 1, 0
    %v905 = vsel %vm889, 1, 0
    %v906 = vsel %vm890, 1, 0
    %v907 = vcvt.s32.f32 %v891
    %v908 = vcvt.s32.f32 %v892
    %v909 = vcvt.s32.f32 %v893
    %v910 = vcvt.s32.f32 %v894
    %v911 = vcvt.s32.f32 %v895
    %v912 = vcvt.s32.f32 %v896
    %v913 = vcvt.s32.f32 %v897
    %v914 = vcvt.s32.f32 %v898
    %v915 = vcvt.s32.f32 %v899
    %v916 = vcvt.s32.f32 %v900
    %v917 = vcvt.s32.f32 %v901
    %v918 = vcvt.s32.f32 %v902
    %v919 = vcvt.s32.f32 %v903
    %v920 = vcvt.s32.f32 %v904
    %v921 = vcvt.s32.f32 %v905
    %v922 = vcvt.s32.f32 %v906
    %v923 = vadd.f32 %v811, %v907
    %v924 = vadd.f32 %v812, %v908
    %v925 = vadd.f32 %v813, %v909
    %v926 = vadd.f32 %v814, %v910
    %v927 = vadd.f32 %v815, %v911
    %v928 = vadd.f32 %v816, %v912
    %v929 = vadd.f32 %v817, %v913
    %v930 = vadd.f32 %v818, %v914
    %v931 = vadd.f32 %v819, %v915
    %v932 = vadd.f32 %v820, %v916
    %v933 = vadd.f32 %v821, %v917
    %v934 = vadd.f32 %v822, %v918
    %v935 = vadd.f32 %v823, %v919
    %v936 = vadd.f32 %v824, %v920
    %v937 = vadd.f32 %v825, %v921
    %v938 = vadd.f32 %v826, %v922
    %v939 = vpack.c.bf16 %v924, %v923
    %v940 = vpack.c.bf16 %v926, %v925
    %v941 = vpack.c.bf16 %v928, %v927
    %v942 = vpack.c.bf16 %v930, %v929
    %v943 = vpack.c.bf16 %v932, %v931
    %v944 = vpack.c.bf16 %v934, %v933
    %v945 = vpack.c.bf16 %v936, %v935
    %v946 = vpack.c.bf16 %v938, %v937
    %947 = vst [vmem:[#allocation2] sm:$0xff] %v939
    %948 = vst [vmem:[#allocation2 + $0x8] sm:$0xff] %v940
    %949 = vst [vmem:[#allocation2 + $0x10] sm:$0xff] %v941
    %950 = vst [vmem:[#allocation2 + $0x18] sm:$0xff] %v942
    %951 = vst [vmem:[#allocation2 + $0x20] sm:$0xff] %v943
    %952 = vst [vmem:[#allocation2 + $0x28] sm:$0xff] %v944
    %953 = vst [vmem:[#allocation2 + $0x30] sm:$0xff] %v945
    %954 = vst [vmem:[#allocation2 + $0x38] sm:$0xff] %v946
    %v955 = vld [vmem:[%s1] sm:$0xff]
    %v956 = vld [vmem:[%s1 + $0x8] sm:$0xff]
    %v957 = vld [vmem:[%s1 + $0x10] sm:$0xff]
    %v958 = vld [vmem:[%s1 + $0x18] sm:$0xff]
    %v959 = vld [vmem:[%s1 + $0x20] sm:$0xff]
    %v960 = vld [vmem:[%s1 + $0x28] sm:$0xff]
    %v961 = vld [vmem:[%s1 + $0x30] sm:$0xff]
    %v962 = vld [vmem:[%s1 + $0x38] sm:$0xff]
    %v963 = vld [vmem:[%s1 + $0x40] sm:$0xff]
    %v964 = vld [vmem:[%s1 + $0x48] sm:$0xff]
    %v965 = vld [vmem:[%s1 + $0x50] sm:$0xff]
    %v966 = vld [vmem:[%s1 + $0x58] sm:$0xff]
    %v967 = vld [vmem:[%s1 + $0x60] sm:$0xff]
    %v968 = vld [vmem:[%s1 + $0x68] sm:$0xff]
    %v969 = vld [vmem:[%s1 + $0x70] sm:$0xff]
    %v970 = vld [vmem:[%s1 + $0x78] sm:$0xff]
    %971 = vset.pattern.permute.xlu0 0
    %972 = vperm.xlu0 %971, %v955
    %v973 = vpop.permute.xlu0 %972
    %974 = vset.pattern.permute.xlu0 0
    %975 = vperm.xlu0 %974, %v956
    %v976 = vpop.permute.xlu0 %975
    %977 = vset.pattern.permute.xlu0 0
    %978 = vperm.xlu0 %977, %v957
    %v979 = vpop.permute.xlu0 %978
    %980 = vset.pattern.permute.xlu0 0
    %981 = vperm.xlu0 %980, %v958
    %v982 = vpop.permute.xlu0 %981
    %983 = vset.pattern.permute.xlu0 0
    %984 = vperm.xlu0 %983, %v959
    %v985 = vpop.permute.xlu0 %984
    %986 = vset.pattern.permute.xlu0 0
    %987 = vperm.xlu0 %986, %v960
    %v988 = vpop.permute.xlu0 %987
    %989 = vset.pattern.permute.xlu0 0
    %990 = vperm.xlu0 %989, %v961
    %v991 = vpop.permute.xlu0 %990
    %992 = vset.pattern.permute.xlu0 0
    %993 = vperm.xlu0 %992, %v962
    %v994 = vpop.permute.xlu0 %993
    %995 = vset.pattern.permute.xlu0 0
    %996 = vperm.xlu0 %995, %v963
    %v997 = vpop.permute.xlu0 %996
    %998 = vset.pattern.permute.xlu0 0
    %999 = vperm.xlu0 %998, %v964
    %v1000 = vpop.permute.xlu0 %999
    %1001 = vset.pattern.permute.xlu0 0
    %1002 = vperm.xlu0 %1001, %v965
    %v1003 = vpop.permute.xlu0 %1002
    %1004 = vset.pattern.permute.xlu0 0
    %1005 = vperm.xlu0 %1004, %v966
    %v1006 = vpop.permute.xlu0 %1005
    %1007 = vset.pattern.permute.xlu0 0
    %1008 = vperm.xlu0 %1007, %v967
    %v1009 = vpop.permute.xlu0 %1008
    %1010 = vset.pattern.permute.xlu0 0
    %1011 = vperm.xlu0 %1010, %v968
    %v1012 = vpop.permute.xlu0 %1011
    %1013 = vset.pattern.permute.xlu0 0
    %1014 = vperm.xlu0 %1013, %v969
    %v1015 = vpop.permute.xlu0 %1014
    %1016 = vset.pattern.permute.xlu0 0
    %1017 = vperm.xlu0 %1016, %v970
    %v1018 = vpop.permute.xlu0 %1017
    %vm1019 = vcmp.eq.s32.totalorder %v973, %v26
    %vm1020 = vcmp.eq.s32.totalorder %v976, %v26
    %vm1021 = vcmp.eq.s32.totalorder %v979, %v26
    %vm1022 = vcmp.eq.s32.totalorder %v982, %v26
    %vm1023 = vcmp.eq.s32.totalorder %v985, %v26
    %vm1024 = vcmp.eq.s32.totalorder %v988, %v26
    %vm1025 = vcmp.eq.s32.totalorder %v991, %v26
    %vm1026 = vcmp.eq.s32.totalorder %v994, %v26
    %vm1027 = vcmp.eq.s32.totalorder %v997, %v26
    %vm1028 = vcmp.eq.s32.totalorder %v1000, %v26
    %vm1029 = vcmp.eq.s32.totalorder %v1003, %v26
    %vm1030 = vcmp.eq.s32.totalorder %v1006, %v26
    %vm1031 = vcmp.eq.s32.totalorder %v1009, %v26
    %vm1032 = vcmp.eq.s32.totalorder %v1012, %v26
    %vm1033 = vcmp.eq.s32.totalorder %v1015, %v26
    %vm1034 = vcmp.eq.s32.totalorder %v1018, %v26
    %v1035 = vsel %vm1019, 1, 0
    %v1036 = vsel %vm1020, 1, 0
    %v1037 = vsel %vm1021, 1, 0
    %v1038 = vsel %vm1022, 1, 0
    %v1039 = vsel %vm1023, 1, 0
    %v1040 = vsel %vm1024, 1, 0
    %v1041 = vsel %vm1025, 1, 0
    %v1042 = vsel %vm1026, 1, 0
    %v1043 = vsel %vm1027, 1, 0
    %v1044 = vsel %vm1028, 1, 0
    %v1045 = vsel %vm1029, 1, 0
    %v1046 = vsel %vm1030, 1, 0
    %v1047 = vsel %vm1031, 1, 0
    %v1048 = vsel %vm1032, 1, 0
    %v1049 = vsel %vm1033, 1, 0
    %v1050 = vsel %vm1034, 1, 0
    %v1051 = vcvt.s32.f32 %v1035
    %v1052 = vcvt.s32.f32 %v1036
    %v1053 = vcvt.s32.f32 %v1037
    %v1054 = vcvt.s32.f32 %v1038
    %v1055 = vcvt.s32.f32 %v1039
    %v1056 = vcvt.s32.f32 %v1040
    %v1057 = vcvt.s32.f32 %v1041
    %v1058 = vcvt.s32.f32 %v1042
    %v1059 = vcvt.s32.f32 %v1043
    %v1060 = vcvt.s32.f32 %v1044
    %v1061 = vcvt.s32.f32 %v1045
    %v1062 = vcvt.s32.f32 %v1046
    %v1063 = vcvt.s32.f32 %v1047
    %v1064 = vcvt.s32.f32 %v1048
    %v1065 = vcvt.s32.f32 %v1049
    %v1066 = vcvt.s32.f32 %v1050
    %v1067 = vadd.f32 %v1051, 0.0
    %v1068 = vadd.f32 %v1052, 0.0
    %v1069 = vadd.f32 %v1053, 0.0
    %v1070 = vadd.f32 %v1054, 0.0
    %v1071 = vadd.f32 %v1055, 0.0
    %v1072 = vadd.f32 %v1056, 0.0
    %v1073 = vadd.f32 %v1057, 0.0
    %v1074 = vadd.f32 %v1058, 0.0
    %v1075 = vadd.f32 %v1059, 0.0
    %v1076 = vadd.f32 %v1060, 0.0
    %v1077 = vadd.f32 %v1061, 0.0
    %v1078 = vadd.f32 %v1062, 0.0
    %v1079 = vadd.f32 %v1063, 0.0
    %v1080 = vadd.f32 %v1064, 0.0
    %v1081 = vadd.f32 %v1065, 0.0
    %v1082 = vadd.f32 %v1066, 0.0
    %1083 = vset.pattern.permute.xlu0 1
    %1084 = vperm.xlu0 %1083, %v955
    %v1085 = vpop.permute.xlu0 %1084
    %1086 = vset.pattern.permute.xlu0 1
    %1087 = vperm.xlu0 %1086, %v956
    %v1088 = vpop.permute.xlu0 %1087
    %1089 = vset.pattern.permute.xlu0 1
    %1090 = vperm.xlu0 %1089, %v957
    %v1091 = vpop.permute.xlu0 %1090
    %1092 = vset.pattern.permute.xlu0 1
    %1093 = vperm.xlu0 %1092, %v958
    %v1094 = vpop.permute.xlu0 %1093
    %1095 = vset.pattern.permute.xlu0 1
    %1096 = vperm.xlu0 %1095, %v959
    %v1097 = vpop.permute.xlu0 %1096
    %1098 = vset.pattern.permute.xlu0 1
    %1099 = vperm.xlu0 %1098, %v960
    %v1100 = vpop.permute.xlu0 %1099
    %1101 = vset.pattern.permute.xlu0 1
    %1102 = vperm.xlu0 %1101, %v961
    %v1103 = vpop.permute.xlu0 %1102
    %1104 = vset.pattern.permute.xlu0 1
    %1105 = vperm.xlu0 %1104, %v962
    %v1106 = vpop.permute.xlu0 %1105
    %1107 = vset.pattern.permute.xlu0 1
    %1108 = vperm.xlu0 %1107, %v963
    %v1109 = vpop.permute.xlu0 %1108
    %1110 = vset.pattern.permute.xlu0 1
    %1111 = vperm.xlu0 %1110, %v964
    %v1112 = vpop.permute.xlu0 %1111
    %1113 = vset.pattern.permute.xlu0 1
    %1114 = vperm.xlu0 %1113, %v965
    %v1115 = vpop.permute.xlu0 %1114
    %1116 = vset.pattern.permute.xlu0 1
    %1117 = vperm.xlu0 %1116, %v966
    %v1118 = vpop.permute.xlu0 %1117
    %1119 = vset.pattern.permute.xlu0 1
    %1120 = vperm.xlu0 %1119, %v967
    %v1121 = vpop.permute.xlu0 %1120
    %1122 = vset.pattern.permute.xlu0 1
    %1123 = vperm.xlu0 %1122, %v968
    %v1124 = vpop.permute.xlu0 %1123
    %1125 = vset.pattern.permute.xlu0 1
    %1126 = vperm.xlu0 %1125, %v969
    %v1127 = vpop.permute.xlu0 %1126
    %1128 = vset.pattern.permute.xlu0 1
    %1129 = vperm.xlu0 %1128, %v970
    %v1130 = vpop.permute.xlu0 %1129
    %vm1131 = vcmp.eq.s32.totalorder %v1085, %v26
    %vm1132 = vcmp.eq.s32.totalorder %v1088, %v26
    %vm1133 = vcmp.eq.s32.totalorder %v1091, %v26
    %vm1134 = vcmp.eq.s32.totalorder %v1094, %v26
    %vm1135 = vcmp.eq.s32.totalorder %v1097, %v26
    %vm1136 = vcmp.eq.s32.totalorder %v1100, %v26
    %vm1137 = vcmp.eq.s32.totalorder %v1103, %v26
    %vm1138 = vcmp.eq.s32.totalorder %v1106, %v26
    %vm1139 = vcmp.eq.s32.totalorder %v1109, %v26
    %vm1140 = vcmp.eq.s32.totalorder %v1112, %v26
    %vm1141 = vcmp.eq.s32.totalorder %v1115, %v26
    %vm1142 = vcmp.eq.s32.totalorder %v1118, %v26
    %vm1143 = vcmp.eq.s32.totalorder %v1121, %v26
    %vm1144 = vcmp.eq.s32.totalorder %v1124, %v26
    %vm1145 = vcmp.eq.s32.totalorder %v1127, %v26
    %vm1146 = vcmp.eq.s32.totalorder %v1130, %v26
    %v1147 = vsel %vm1131, 1, 0
    %v1148 = vsel %vm1132, 1, 0
    %v1149 = vsel %vm1133, 1, 0
    %v1150 = vsel %vm1134, 1, 0
    %v1151 = vsel %vm1135, 1, 0
    %v1152 = vsel %vm1136, 1, 0
    %v1153 = vsel %vm1137, 1, 0
    %v1154 = vsel %vm1138, 1, 0
    %v1155 = vsel %vm1139, 1, 0
    %v1156 = vsel %vm1140, 1, 0
    %v1157 = vsel %vm1141, 1, 0
    %v1158 = vsel %vm1142, 1, 0
    %v1159 = vsel %vm1143, 1, 0
    %v1160 = vsel %vm1144, 1, 0
    %v1161 = vsel %vm1145, 1, 0
    %v1162 = vsel %vm1146, 1, 0
    %v1163 = vcvt.s32.f32 %v1147
    %v1164 = vcvt.s32.f32 %v1148
    %v1165 = vcvt.s32.f32 %v1149
    %v1166 = vcvt.s32.f32 %v1150
    %v1167 = vcvt.s32.f32 %v1151
    %v1168 = vcvt.s32.f32 %v1152
    %v1169 = vcvt.s32.f32 %v1153
    %v1170 = vcvt.s32.f32 %v1154
    %v1171 = vcvt.s32.f32 %v1155
    %v1172 = vcvt.s32.f32 %v1156
    %v1173 = vcvt.s32.f32 %v1157
    %v1174 = vcvt.s32.f32 %v1158
    %v1175 = vcvt.s32.f32 %v1159
    %v1176 = vcvt.s32.f32 %v1160
    %v1177 = vcvt.s32.f32 %v1161
    %v1178 = vcvt.s32.f32 %v1162
    %v1179 = vadd.f32 %v1067, %v1163
    %v1180 = vadd.f32 %v1068, %v1164
    %v1181 = vadd.f32 %v1069, %v1165
    %v1182 = vadd.f32 %v1070, %v1166
    %v1183 = vadd.f32 %v1071, %v1167
    %v1184 = vadd.f32 %v1072, %v1168
    %v1185 = vadd.f32 %v1073, %v1169
    %v1186 = vadd.f32 %v1074, %v1170
    %v1187 = vadd.f32 %v1075, %v1171
    %v1188 = vadd.f32 %v1076, %v1172
    %v1189 = vadd.f32 %v1077, %v1173
    %v1190 = vadd.f32 %v1078, %v1174
    %v1191 = vadd.f32 %v1079, %v1175
    %v1192 = vadd.f32 %v1080, %v1176
    %v1193 = vadd.f32 %v1081, %v1177
    %v1194 = vadd.f32 %v1082, %v1178
    %1195 = vset.pattern.permute.xlu0 2
    %1196 = vperm.xlu0 %1195, %v955
    %v1197 = vpop.permute.xlu0 %1196
    %1198 = vset.pattern.permute.xlu0 2
    %1199 = vperm.xlu0 %1198, %v956
    %v1200 = vpop.permute.xlu0 %1199
    %1201 = vset.pattern.permute.xlu0 2
    %1202 = vperm.xlu0 %1201, %v957
    %v1203 = vpop.permute.xlu0 %1202
    %1204 = vset.pattern.permute.xlu0 2
    %1205 = vperm.xlu0 %1204, %v958
    %v1206 = vpop.permute.xlu0 %1205
    %1207 = vset.pattern.permute.xlu0 2
    %1208 = vperm.xlu0 %1207, %v959
    %v1209 = vpop.permute.xlu0 %1208
    %1210 = vset.pattern.permute.xlu0 2
    %1211 = vperm.xlu0 %1210, %v960
    %v1212 = vpop.permute.xlu0 %1211
    %1213 = vset.pattern.permute.xlu0 2
    %1214 = vperm.xlu0 %1213, %v961
    %v1215 = vpop.permute.xlu0 %1214
    %1216 = vset.pattern.permute.xlu0 2
    %1217 = vperm.xlu0 %1216, %v962
    %v1218 = vpop.permute.xlu0 %1217
    %1219 = vset.pattern.permute.xlu0 2
    %1220 = vperm.xlu0 %1219, %v963
    %v1221 = vpop.permute.xlu0 %1220
    %1222 = vset.pattern.permute.xlu0 2
    %1223 = vperm.xlu0 %1222, %v964
    %v1224 = vpop.permute.xlu0 %1223
    %1225 = vset.pattern.permute.xlu0 2
    %1226 = vperm.xlu0 %1225, %v965
    %v1227 = vpop.permute.xlu0 %1226
    %1228 = vset.pattern.permute.xlu0 2
    %1229 = vperm.xlu0 %1228, %v966
    %v1230 = vpop.permute.xlu0 %1229
    %1231 = vset.pattern.permute.xlu0 2
    %1232 = vperm.xlu0 %1231, %v967
    %v1233 = vpop.permute.xlu0 %1232
    %1234 = vset.pattern.permute.xlu0 2
    %1235 = vperm.xlu0 %1234, %v968
    %v1236 = vpop.permute.xlu0 %1235
    %1237 = vset.pattern.permute.xlu0 2
    %1238 = vperm.xlu0 %1237, %v969
    %v1239 = vpop.permute.xlu0 %1238
    %1240 = vset.pattern.permute.xlu0 2
    %1241 = vperm.xlu0 %1240, %v970
    %v1242 = vpop.permute.xlu0 %1241
    %vm1243 = vcmp.eq.s32.totalorder %v1197, %v26
    %vm1244 = vcmp.eq.s32.totalorder %v1200, %v26
    %vm1245 = vcmp.eq.s32.totalorder %v1203, %v26
    %vm1246 = vcmp.eq.s32.totalorder %v1206, %v26
    %vm1247 = vcmp.eq.s32.totalorder %v1209, %v26
    %vm1248 = vcmp.eq.s32.totalorder %v1212, %v26
    %vm1249 = vcmp.eq.s32.totalorder %v1215, %v26
    %vm1250 = vcmp.eq.s32.totalorder %v1218, %v26
    %vm1251 = vcmp.eq.s32.totalorder %v1221, %v26
    %vm1252 = vcmp.eq.s32.totalorder %v1224, %v26
    %vm1253 = vcmp.eq.s32.totalorder %v1227, %v26
    %vm1254 = vcmp.eq.s32.totalorder %v1230, %v26
    %vm1255 = vcmp.eq.s32.totalorder %v1233, %v26
    %vm1256 = vcmp.eq.s32.totalorder %v1236, %v26
    %vm1257 = vcmp.eq.s32.totalorder %v1239, %v26
    %vm1258 = vcmp.eq.s32.totalorder %v1242, %v26
    %v1259 = vsel %vm1243, 1, 0
    %v1260 = vsel %vm1244, 1, 0
    %v1261 = vsel %vm1245, 1, 0
    %v1262 = vsel %vm1246, 1, 0
    %v1263 = vsel %vm1247, 1, 0
    %v1264 = vsel %vm1248, 1, 0
    %v1265 = vsel %vm1249, 1, 0
    %v1266 = vsel %vm1250, 1, 0
    %v1267 = vsel %vm1251, 1, 0
    %v1268 = vsel %vm1252, 1, 0
    %v1269 = vsel %vm1253, 1, 0
    %v1270 = vsel %vm1254, 1, 0
    %v1271 = vsel %vm1255, 1, 0
    %v1272 = vsel %vm1256, 1, 0
    %v1273 = vsel %vm1257, 1, 0
    %v1274 = vsel %vm1258, 1, 0
    %v1275 = vcvt.s32.f32 %v1259
    %v1276 = vcvt.s32.f32 %v1260
    %v1277 = vcvt.s32.f32 %v1261
    %v1278 = vcvt.s32.f32 %v1262
    %v1279 = vcvt.s32.f32 %v1263
    %v1280 = vcvt.s32.f32 %v1264
    %v1281 = vcvt.s32.f32 %v1265
    %v1282 = vcvt.s32.f32 %v1266
    %v1283 = vcvt.s32.f32 %v1267
    %v1284 = vcvt.s32.f32 %v1268
    %v1285 = vcvt.s32.f32 %v1269
    %v1286 = vcvt.s32.f32 %v1270
    %v1287 = vcvt.s32.f32 %v1271
    %v1288 = vcvt.s32.f32 %v1272
    %v1289 = vcvt.s32.f32 %v1273
    %v1290 = vcvt.s32.f32 %v1274
    %v1291 = vadd.f32 %v1179, %v1275
    %v1292 = vadd.f32 %v1180, %v1276
    %v1293 = vadd.f32 %v1181, %v1277
    %v1294 = vadd.f32 %v1182, %v1278
    %v1295 = vadd.f32 %v1183, %v1279
    %v1296 = vadd.f32 %v1184, %v1280
    %v1297 = vadd.f32 %v1185, %v1281
    %v1298 = vadd.f32 %v1186, %v1282
    %v1299 = vadd.f32 %v1187, %v1283
    %v1300 = vadd.f32 %v1188, %v1284
    %v1301 = vadd.f32 %v1189, %v1285
    %v1302 = vadd.f32 %v1190, %v1286
    %v1303 = vadd.f32 %v1191, %v1287
    %v1304 = vadd.f32 %v1192, %v1288
    %v1305 = vadd.f32 %v1193, %v1289
    %v1306 = vadd.f32 %v1194, %v1290
    %1307 = vset.pattern.permute.xlu0 3
    %1308 = vperm.xlu0 %1307, %v955
    %v1309 = vpop.permute.xlu0 %1308
    %1310 = vset.pattern.permute.xlu0 3
    %1311 = vperm.xlu0 %1310, %v956
    %v1312 = vpop.permute.xlu0 %1311
    %1313 = vset.pattern.permute.xlu0 3
    %1314 = vperm.xlu0 %1313, %v957
    %v1315 = vpop.permute.xlu0 %1314
    %1316 = vset.pattern.permute.xlu0 3
    %1317 = vperm.xlu0 %1316, %v958
    %v1318 = vpop.permute.xlu0 %1317
    %1319 = vset.pattern.permute.xlu0 3
    %1320 = vperm.xlu0 %1319, %v959
    %v1321 = vpop.permute.xlu0 %1320
    %1322 = vset.pattern.permute.xlu0 3
    %1323 = vperm.xlu0 %1322, %v960
    %v1324 = vpop.permute.xlu0 %1323
    %1325 = vset.pattern.permute.xlu0 3
    %1326 = vperm.xlu0 %1325, %v961
    %v1327 = vpop.permute.xlu0 %1326
    %1328 = vset.pattern.permute.xlu0 3
    %1329 = vperm.xlu0 %1328, %v962
    %v1330 = vpop.permute.xlu0 %1329
    %1331 = vset.pattern.permute.xlu0 3
    %1332 = vperm.xlu0 %1331, %v963
    %v1333 = vpop.permute.xlu0 %1332
    %1334 = vset.pattern.permute.xlu0 3
    %1335 = vperm.xlu0 %1334, %v964
    %v1336 = vpop.permute.xlu0 %1335
    %1337 = vset.pattern.permute.xlu0 3
    %1338 = vperm.xlu0 %1337, %v965
    %v1339 = vpop.permute.xlu0 %1338
    %1340 = vset.pattern.permute.xlu0 3
    %1341 = vperm.xlu0 %1340, %v966
    %v1342 = vpop.permute.xlu0 %1341
    %1343 = vset.pattern.permute.xlu0 3
    %1344 = vperm.xlu0 %1343, %v967
    %v1345 = vpop.permute.xlu0 %1344
    %1346 = vset.pattern.permute.xlu0 3
    %1347 = vperm.xlu0 %1346, %v968
    %v1348 = vpop.permute.xlu0 %1347
    %1349 = vset.pattern.permute.xlu0 3
    %1350 = vperm.xlu0 %1349, %v969
    %v1351 = vpop.permute.xlu0 %1350
    %1352 = vset.pattern.permute.xlu0 3
    %1353 = vperm.xlu0 %1352, %v970
    %v1354 = vpop.permute.xlu0 %1353
    %vm1355 = vcmp.eq.s32.totalorder %v1309, %v26
    %vm1356 = vcmp.eq.s32.totalorder %v1312, %v26
    %vm1357 = vcmp.eq.s32.totalorder %v1315, %v26
    %vm1358 = vcmp.eq.s32.totalorder %v1318, %v26
    %vm1359 = vcmp.eq.s32.totalorder %v1321, %v26
    %vm1360 = vcmp.eq.s32.totalorder %v1324, %v26
    %vm1361 = vcmp.eq.s32.totalorder %v1327, %v26
    %vm1362 = vcmp.eq.s32.totalorder %v1330, %v26
    %vm1363 = vcmp.eq.s32.totalorder %v1333, %v26
    %vm1364 = vcmp.eq.s32.totalorder %v1336, %v26
    %vm1365 = vcmp.eq.s32.totalorder %v1339, %v26
    %vm1366 = vcmp.eq.s32.totalorder %v1342, %v26
    %vm1367 = vcmp.eq.s32.totalorder %v1345, %v26
    %vm1368 = vcmp.eq.s32.totalorder %v1348, %v26
    %vm1369 = vcmp.eq.s32.totalorder %v1351, %v26
    %vm1370 = vcmp.eq.s32.totalorder %v1354, %v26
    %v1371 = vsel %vm1355, 1, 0
    %v1372 = vsel %vm1356, 1, 0
    %v1373 = vsel %vm1357, 1, 0
    %v1374 = vsel %vm1358, 1, 0
    %v1375 = vsel %vm1359, 1, 0
    %v1376 = vsel %vm1360, 1, 0
    %v1377 = vsel %vm1361, 1, 0
    %v1378 = vsel %vm1362, 1, 0
    %v1379 = vsel %vm1363, 1, 0
    %v1380 = vsel %vm1364, 1, 0
    %v1381 = vsel %vm1365, 1, 0
    %v1382 = vsel %vm1366, 1, 0
    %v1383 = vsel %vm1367, 1, 0
    %v1384 = vsel %vm1368, 1, 0
    %v1385 = vsel %vm1369, 1, 0
    %v1386 = vsel %vm1370, 1, 0
    %v1387 = vcvt.s32.f32 %v1371
    %v1388 = vcvt.s32.f32 %v1372
    %v1389 = vcvt.s32.f32 %v1373
    %v1390 = vcvt.s32.f32 %v1374
    %v1391 = vcvt.s32.f32 %v1375
    %v1392 = vcvt.s32.f32 %v1376
    %v1393 = vcvt.s32.f32 %v1377
    %v1394 = vcvt.s32.f32 %v1378
    %v1395 = vcvt.s32.f32 %v1379
    %v1396 = vcvt.s32.f32 %v1380
    %v1397 = vcvt.s32.f32 %v1381
    %v1398 = vcvt.s32.f32 %v1382
    %v1399 = vcvt.s32.f32 %v1383
    %v1400 = vcvt.s32.f32 %v1384
    %v1401 = vcvt.s32.f32 %v1385
    %v1402 = vcvt.s32.f32 %v1386
    %v1403 = vadd.f32 %v1291, %v1387
    %v1404 = vadd.f32 %v1292, %v1388
    %v1405 = vadd.f32 %v1293, %v1389
    %v1406 = vadd.f32 %v1294, %v1390
    %v1407 = vadd.f32 %v1295, %v1391
    %v1408 = vadd.f32 %v1296, %v1392
    %v1409 = vadd.f32 %v1297, %v1393
    %v1410 = vadd.f32 %v1298, %v1394
    %v1411 = vadd.f32 %v1299, %v1395
    %v1412 = vadd.f32 %v1300, %v1396
    %v1413 = vadd.f32 %v1301, %v1397
    %v1414 = vadd.f32 %v1302, %v1398
    %v1415 = vadd.f32 %v1303, %v1399
    %v1416 = vadd.f32 %v1304, %v1400
    %v1417 = vadd.f32 %v1305, %v1401
    %v1418 = vadd.f32 %v1306, %v1402
    %1419 = vset.pattern.permute.xlu0 4
    %1420 = vperm.xlu0 %1419, %v955
    %v1421 = vpop.permute.xlu0 %1420
    %1422 = vset.pattern.permute.xlu0 4
    %1423 = vperm.xlu0 %1422, %v956
    %v1424 = vpop.permute.xlu0 %1423
    %1425 = vset.pattern.permute.xlu0 4
    %1426 = vperm.xlu0 %1425, %v957
    %v1427 = vpop.permute.xlu0 %1426
    %1428 = vset.pattern.permute.xlu0 4
    %1429 = vperm.xlu0 %1428, %v958
    %v1430 = vpop.permute.xlu0 %1429
    %1431 = vset.pattern.permute.xlu0 4
    %1432 = vperm.xlu0 %1431, %v959
    %v1433 = vpop.permute.xlu0 %1432
    %1434 = vset.pattern.permute.xlu0 4
    %1435 = vperm.xlu0 %1434, %v960
    %v1436 = vpop.permute.xlu0 %1435
    %1437 = vset.pattern.permute.xlu0 4
    %1438 = vperm.xlu0 %1437, %v961
    %v1439 = vpop.permute.xlu0 %1438
    %1440 = vset.pattern.permute.xlu0 4
    %1441 = vperm.xlu0 %1440, %v962
    %v1442 = vpop.permute.xlu0 %1441
    %1443 = vset.pattern.permute.xlu0 4
    %1444 = vperm.xlu0 %1443, %v963
    %v1445 = vpop.permute.xlu0 %1444
    %1446 = vset.pattern.permute.xlu0 4
    %1447 = vperm.xlu0 %1446, %v964
    %v1448 = vpop.permute.xlu0 %1447
    %1449 = vset.pattern.permute.xlu0 4
    %1450 = vperm.xlu0 %1449, %v965
    %v1451 = vpop.permute.xlu0 %1450
    %1452 = vset.pattern.permute.xlu0 4
    %1453 = vperm.xlu0 %1452, %v966
    %v1454 = vpop.permute.xlu0 %1453
    %1455 = vset.pattern.permute.xlu0 4
    %1456 = vperm.xlu0 %1455, %v967
    %v1457 = vpop.permute.xlu0 %1456
    %1458 = vset.pattern.permute.xlu0 4
    %1459 = vperm.xlu0 %1458, %v968
    %v1460 = vpop.permute.xlu0 %1459
    %1461 = vset.pattern.permute.xlu0 4
    %1462 = vperm.xlu0 %1461, %v969
    %v1463 = vpop.permute.xlu0 %1462
    %1464 = vset.pattern.permute.xlu0 4
    %1465 = vperm.xlu0 %1464, %v970
    %v1466 = vpop.permute.xlu0 %1465
    %vm1467 = vcmp.eq.s32.totalorder %v1421, %v26
    %vm1468 = vcmp.eq.s32.totalorder %v1424, %v26
    %vm1469 = vcmp.eq.s32.totalorder %v1427, %v26
    %vm1470 = vcmp.eq.s32.totalorder %v1430, %v26
    %vm1471 = vcmp.eq.s32.totalorder %v1433, %v26
    %vm1472 = vcmp.eq.s32.totalorder %v1436, %v26
    %vm1473 = vcmp.eq.s32.totalorder %v1439, %v26
    %vm1474 = vcmp.eq.s32.totalorder %v1442, %v26
    %vm1475 = vcmp.eq.s32.totalorder %v1445, %v26
    %vm1476 = vcmp.eq.s32.totalorder %v1448, %v26
    %vm1477 = vcmp.eq.s32.totalorder %v1451, %v26
    %vm1478 = vcmp.eq.s32.totalorder %v1454, %v26
    %vm1479 = vcmp.eq.s32.totalorder %v1457, %v26
    %vm1480 = vcmp.eq.s32.totalorder %v1460, %v26
    %vm1481 = vcmp.eq.s32.totalorder %v1463, %v26
    %vm1482 = vcmp.eq.s32.totalorder %v1466, %v26
    %v1483 = vsel %vm1467, 1, 0
    %v1484 = vsel %vm1468, 1, 0
    %v1485 = vsel %vm1469, 1, 0
    %v1486 = vsel %vm1470, 1, 0
    %v1487 = vsel %vm1471, 1, 0
    %v1488 = vsel %vm1472, 1, 0
    %v1489 = vsel %vm1473, 1, 0
    %v1490 = vsel %vm1474, 1, 0
    %v1491 = vsel %vm1475, 1, 0
    %v1492 = vsel %vm1476, 1, 0
    %v1493 = vsel %vm1477, 1, 0
    %v1494 = vsel %vm1478, 1, 0
    %v1495 = vsel %vm1479, 1, 0
    %v1496 = vsel %vm1480, 1, 0
    %v1497 = vsel %vm1481, 1, 0
    %v1498 = vsel %vm1482, 1, 0
    %v1499 = vcvt.s32.f32 %v1483
    %v1500 = vcvt.s32.f32 %v1484
    %v1501 = vcvt.s32.f32 %v1485
    %v1502 = vcvt.s32.f32 %v1486
    %v1503 = vcvt.s32.f32 %v1487
    %v1504 = vcvt.s32.f32 %v1488
    %v1505 = vcvt.s32.f32 %v1489
    %v1506 = vcvt.s32.f32 %v1490
    %v1507 = vcvt.s32.f32 %v1491
    %v1508 = vcvt.s32.f32 %v1492
    %v1509 = vcvt.s32.f32 %v1493
    %v1510 = vcvt.s32.f32 %v1494
    %v1511 = vcvt.s32.f32 %v1495
    %v1512 = vcvt.s32.f32 %v1496
    %v1513 = vcvt.s32.f32 %v1497
    %v1514 = vcvt.s32.f32 %v1498
    %v1515 = vadd.f32 %v1403, %v1499
    %v1516 = vadd.f32 %v1404, %v1500
    %v1517 = vadd.f32 %v1405, %v1501
    %v1518 = vadd.f32 %v1406, %v1502
    %v1519 = vadd.f32 %v1407, %v1503
    %v1520 = vadd.f32 %v1408, %v1504
    %v1521 = vadd.f32 %v1409, %v1505
    %v1522 = vadd.f32 %v1410, %v1506
    %v1523 = vadd.f32 %v1411, %v1507
    %v1524 = vadd.f32 %v1412, %v1508
    %v1525 = vadd.f32 %v1413, %v1509
    %v1526 = vadd.f32 %v1414, %v1510
    %v1527 = vadd.f32 %v1415, %v1511
    %v1528 = vadd.f32 %v1416, %v1512
    %v1529 = vadd.f32 %v1417, %v1513
    %v1530 = vadd.f32 %v1418, %v1514
    %1531 = vset.pattern.permute.xlu0 5
    %1532 = vperm.xlu0 %1531, %v955
    %v1533 = vpop.permute.xlu0 %1532
    %1534 = vset.pattern.permute.xlu0 5
    %1535 = vperm.xlu0 %1534, %v956
    %v1536 = vpop.permute.xlu0 %1535
    %1537 = vset.pattern.permute.xlu0 5
    %1538 = vperm.xlu0 %1537, %v957
    %v1539 = vpop.permute.xlu0 %1538
    %1540 = vset.pattern.permute.xlu0 5
    %1541 = vperm.xlu0 %1540, %v958
    %v1542 = vpop.permute.xlu0 %1541
    %1543 = vset.pattern.permute.xlu0 5
    %1544 = vperm.xlu0 %1543, %v959
    %v1545 = vpop.permute.xlu0 %1544
    %1546 = vset.pattern.permute.xlu0 5
    %1547 = vperm.xlu0 %1546, %v960
    %v1548 = vpop.permute.xlu0 %1547
    %1549 = vset.pattern.permute.xlu0 5
    %1550 = vperm.xlu0 %1549, %v961
    %v1551 = vpop.permute.xlu0 %1550
    %1552 = vset.pattern.permute.xlu0 5
    %1553 = vperm.xlu0 %1552, %v962
    %v1554 = vpop.permute.xlu0 %1553
    %1555 = vset.pattern.permute.xlu0 5
    %1556 = vperm.xlu0 %1555, %v963
    %v1557 = vpop.permute.xlu0 %1556
    %1558 = vset.pattern.permute.xlu0 5
    %1559 = vperm.xlu0 %1558, %v964
    %v1560 = vpop.permute.xlu0 %1559
    %1561 = vset.pattern.permute.xlu0 5
    %1562 = vperm.xlu0 %1561, %v965
    %v1563 = vpop.permute.xlu0 %1562
    %1564 = vset.pattern.permute.xlu0 5
    %1565 = vperm.xlu0 %1564, %v966
    %v1566 = vpop.permute.xlu0 %1565
    %1567 = vset.pattern.permute.xlu0 5
    %1568 = vperm.xlu0 %1567, %v967
    %v1569 = vpop.permute.xlu0 %1568
    %1570 = vset.pattern.permute.xlu0 5
    %1571 = vperm.xlu0 %1570, %v968
    %v1572 = vpop.permute.xlu0 %1571
    %1573 = vset.pattern.permute.xlu0 5
    %1574 = vperm.xlu0 %1573, %v969
    %v1575 = vpop.permute.xlu0 %1574
    %1576 = vset.pattern.permute.xlu0 5
    %1577 = vperm.xlu0 %1576, %v970
    %v1578 = vpop.permute.xlu0 %1577
    %vm1579 = vcmp.eq.s32.totalorder %v1533, %v26
    %vm1580 = vcmp.eq.s32.totalorder %v1536, %v26
    %vm1581 = vcmp.eq.s32.totalorder %v1539, %v26
    %vm1582 = vcmp.eq.s32.totalorder %v1542, %v26
    %vm1583 = vcmp.eq.s32.totalorder %v1545, %v26
    %vm1584 = vcmp.eq.s32.totalorder %v1548, %v26
    %vm1585 = vcmp.eq.s32.totalorder %v1551, %v26
    %vm1586 = vcmp.eq.s32.totalorder %v1554, %v26
    %vm1587 = vcmp.eq.s32.totalorder %v1557, %v26
    %vm1588 = vcmp.eq.s32.totalorder %v1560, %v26
    %vm1589 = vcmp.eq.s32.totalorder %v1563, %v26
    %vm1590 = vcmp.eq.s32.totalorder %v1566, %v26
    %vm1591 = vcmp.eq.s32.totalorder %v1569, %v26
    %vm1592 = vcmp.eq.s32.totalorder %v1572, %v26
    %vm1593 = vcmp.eq.s32.totalorder %v1575, %v26
    %vm1594 = vcmp.eq.s32.totalorder %v1578, %v26
    %v1595 = vsel %vm1579, 1, 0
    %v1596 = vsel %vm1580, 1, 0
    %v1597 = vsel %vm1581, 1, 0
    %v1598 = vsel %vm1582, 1, 0
    %v1599 = vsel %vm1583, 1, 0
    %v1600 = vsel %vm1584, 1, 0
    %v1601 = vsel %vm1585, 1, 0
    %v1602 = vsel %vm1586, 1, 0
    %v1603 = vsel %vm1587, 1, 0
    %v1604 = vsel %vm1588, 1, 0
    %v1605 = vsel %vm1589, 1, 0
    %v1606 = vsel %vm1590, 1, 0
    %v1607 = vsel %vm1591, 1, 0
    %v1608 = vsel %vm1592, 1, 0
    %v1609 = vsel %vm1593, 1, 0
    %v1610 = vsel %vm1594, 1, 0
    %v1611 = vcvt.s32.f32 %v1595
    %v1612 = vcvt.s32.f32 %v1596
    %v1613 = vcvt.s32.f32 %v1597
    %v1614 = vcvt.s32.f32 %v1598
    %v1615 = vcvt.s32.f32 %v1599
    %v1616 = vcvt.s32.f32 %v1600
    %v1617 = vcvt.s32.f32 %v1601
    %v1618 = vcvt.s32.f32 %v1602
    %v1619 = vcvt.s32.f32 %v1603
    %v1620 = vcvt.s32.f32 %v1604
    %v1621 = vcvt.s32.f32 %v1605
    %v1622 = vcvt.s32.f32 %v1606
    %v1623 = vcvt.s32.f32 %v1607
    %v1624 = vcvt.s32.f32 %v1608
    %v1625 = vcvt.s32.f32 %v1609
    %v1626 = vcvt.s32.f32 %v1610
    %v1627 = vadd.f32 %v1515, %v1611
    %v1628 = vadd.f32 %v1516, %v1612
    %v1629 = vadd.f32 %v1517, %v1613
    %v1630 = vadd.f32 %v1518, %v1614
    %v1631 = vadd.f32 %v1519, %v1615
    %v1632 = vadd.f32 %v1520, %v1616
    %v1633 = vadd.f32 %v1521, %v1617
    %v1634 = vadd.f32 %v1522, %v1618
    %v1635 = vadd.f32 %v1523, %v1619
    %v1636 = vadd.f32 %v1524, %v1620
    %v1637 = vadd.f32 %v1525, %v1621
    %v1638 = vadd.f32 %v1526, %v1622
    %v1639 = vadd.f32 %v1527, %v1623
    %v1640 = vadd.f32 %v1528, %v1624
    %v1641 = vadd.f32 %v1529, %v1625
    %v1642 = vadd.f32 %v1530, %v1626
    %1643 = vset.pattern.permute.xlu0 6
    %1644 = vperm.xlu0 %1643, %v955
    %v1645 = vpop.permute.xlu0 %1644
    %1646 = vset.pattern.permute.xlu0 6
    %1647 = vperm.xlu0 %1646, %v956
    %v1648 = vpop.permute.xlu0 %1647
    %1649 = vset.pattern.permute.xlu0 6
    %1650 = vperm.xlu0 %1649, %v957
    %v1651 = vpop.permute.xlu0 %1650
    %1652 = vset.pattern.permute.xlu0 6
    %1653 = vperm.xlu0 %1652, %v958
    %v1654 = vpop.permute.xlu0 %1653
    %1655 = vset.pattern.permute.xlu0 6
    %1656 = vperm.xlu0 %1655, %v959
    %v1657 = vpop.permute.xlu0 %1656
    %1658 = vset.pattern.permute.xlu0 6
    %1659 = vperm.xlu0 %1658, %v960
    %v1660 = vpop.permute.xlu0 %1659
    %1661 = vset.pattern.permute.xlu0 6
    %1662 = vperm.xlu0 %1661, %v961
    %v1663 = vpop.permute.xlu0 %1662
    %1664 = vset.pattern.permute.xlu0 6
    %1665 = vperm.xlu0 %1664, %v962
    %v1666 = vpop.permute.xlu0 %1665
    %1667 = vset.pattern.permute.xlu0 6
    %1668 = vperm.xlu0 %1667, %v963
    %v1669 = vpop.permute.xlu0 %1668
    %1670 = vset.pattern.permute.xlu0 6
    %1671 = vperm.xlu0 %1670, %v964
    %v1672 = vpop.permute.xlu0 %1671
    %1673 = vset.pattern.permute.xlu0 6
    %1674 = vperm.xlu0 %1673, %v965
    %v1675 = vpop.permute.xlu0 %1674
    %1676 = vset.pattern.permute.xlu0 6
    %1677 = vperm.xlu0 %1676, %v966
    %v1678 = vpop.permute.xlu0 %1677
    %1679 = vset.pattern.permute.xlu0 6
    %1680 = vperm.xlu0 %1679, %v967
    %v1681 = vpop.permute.xlu0 %1680
    %1682 = vset.pattern.permute.xlu0 6
    %1683 = vperm.xlu0 %1682, %v968
    %v1684 = vpop.permute.xlu0 %1683
    %1685 = vset.pattern.permute.xlu0 6
    %1686 = vperm.xlu0 %1685, %v969
    %v1687 = vpop.permute.xlu0 %1686
    %1688 = vset.pattern.permute.xlu0 6
    %1689 = vperm.xlu0 %1688, %v970
    %v1690 = vpop.permute.xlu0 %1689
    %vm1691 = vcmp.eq.s32.totalorder %v1645, %v26
    %vm1692 = vcmp.eq.s32.totalorder %v1648, %v26
    %vm1693 = vcmp.eq.s32.totalorder %v1651, %v26
    %vm1694 = vcmp.eq.s32.totalorder %v1654, %v26
    %vm1695 = vcmp.eq.s32.totalorder %v1657, %v26
    %vm1696 = vcmp.eq.s32.totalorder %v1660, %v26
    %vm1697 = vcmp.eq.s32.totalorder %v1663, %v26
    %vm1698 = vcmp.eq.s32.totalorder %v1666, %v26
    %vm1699 = vcmp.eq.s32.totalorder %v1669, %v26
    %vm1700 = vcmp.eq.s32.totalorder %v1672, %v26
    %vm1701 = vcmp.eq.s32.totalorder %v1675, %v26
    %vm1702 = vcmp.eq.s32.totalorder %v1678, %v26
    %vm1703 = vcmp.eq.s32.totalorder %v1681, %v26
    %vm1704 = vcmp.eq.s32.totalorder %v1684, %v26
    %vm1705 = vcmp.eq.s32.totalorder %v1687, %v26
    %vm1706 = vcmp.eq.s32.totalorder %v1690, %v26
    %v1707 = vsel %vm1691, 1, 0
    %v1708 = vsel %vm1692, 1, 0
    %v1709 = vsel %vm1693, 1, 0
    %v1710 = vsel %vm1694, 1, 0
    %v1711 = vsel %vm1695, 1, 0
    %v1712 = vsel %vm1696, 1, 0
    %v1713 = vsel %vm1697, 1, 0
    %v1714 = vsel %vm1698, 1, 0
    %v1715 = vsel %vm1699, 1, 0
    %v1716 = vsel %vm1700, 1, 0
    %v1717 = vsel %vm1701, 1, 0
    %v1718 = vsel %vm1702, 1, 0
    %v1719 = vsel %vm1703, 1, 0
    %v1720 = vsel %vm1704, 1, 0
    %v1721 = vsel %vm1705, 1, 0
    %v1722 = vsel %vm1706, 1, 0
    %v1723 = vcvt.s32.f32 %v1707
    %v1724 = vcvt.s32.f32 %v1708
    %v1725 = vcvt.s32.f32 %v1709
    %v1726 = vcvt.s32.f32 %v1710
    %v1727 = vcvt.s32.f32 %v1711
    %v1728 = vcvt.s32.f32 %v1712
    %v1729 = vcvt.s32.f32 %v1713
    %v1730 = vcvt.s32.f32 %v1714
    %v1731 = vcvt.s32.f32 %v1715
    %v1732 = vcvt.s32.f32 %v1716
    %v1733 = vcvt.s32.f32 %v1717
    %v1734 = vcvt.s32.f32 %v1718
    %v1735 = vcvt.s32.f32 %v1719
    %v1736 = vcvt.s32.f32 %v1720
    %v1737 = vcvt.s32.f32 %v1721
    %v1738 = vcvt.s32.f32 %v1722
    %v1739 = vadd.f32 %v1627, %v1723
    %v1740 = vadd.f32 %v1628, %v1724
    %v1741 = vadd.f32 %v1629, %v1725
    %v1742 = vadd.f32 %v1630, %v1726
    %v1743 = vadd.f32 %v1631, %v1727
    %v1744 = vadd.f32 %v1632, %v1728
    %v1745 = vadd.f32 %v1633, %v1729
    %v1746 = vadd.f32 %v1634, %v1730
    %v1747 = vadd.f32 %v1635, %v1731
    %v1748 = vadd.f32 %v1636, %v1732
    %v1749 = vadd.f32 %v1637, %v1733
    %v1750 = vadd.f32 %v1638, %v1734
    %v1751 = vadd.f32 %v1639, %v1735
    %v1752 = vadd.f32 %v1640, %v1736
    %v1753 = vadd.f32 %v1641, %v1737
    %v1754 = vadd.f32 %v1642, %v1738
    %1755 = vset.pattern.permute.xlu0 7
    %1756 = vperm.xlu0 %1755, %v955
    %v1757 = vpop.permute.xlu0 %1756
    %1758 = vset.pattern.permute.xlu0 7
    %1759 = vperm.xlu0 %1758, %v956
    %v1760 = vpop.permute.xlu0 %1759
    %1761 = vset.pattern.permute.xlu0 7
    %1762 = vperm.xlu0 %1761, %v957
    %v1763 = vpop.permute.xlu0 %1762
    %1764 = vset.pattern.permute.xlu0 7
    %1765 = vperm.xlu0 %1764, %v958
    %v1766 = vpop.permute.xlu0 %1765
    %1767 = vset.pattern.permute.xlu0 7
    %1768 = vperm.xlu0 %1767, %v959
    %v1769 = vpop.permute.xlu0 %1768
    %1770 = vset.pattern.permute.xlu0 7
    %1771 = vperm.xlu0 %1770, %v960
    %v1772 = vpop.permute.xlu0 %1771
    %1773 = vset.pattern.permute.xlu0 7
    %1774 = vperm.xlu0 %1773, %v961
    %v1775 = vpop.permute.xlu0 %1774
    %1776 = vset.pattern.permute.xlu0 7
    %1777 = vperm.xlu0 %1776, %v962
    %v1778 = vpop.permute.xlu0 %1777
    %1779 = vset.pattern.permute.xlu0 7
    %1780 = vperm.xlu0 %1779, %v963
    %v1781 = vpop.permute.xlu0 %1780
    %1782 = vset.pattern.permute.xlu0 7
    %1783 = vperm.xlu0 %1782, %v964
    %v1784 = vpop.permute.xlu0 %1783
    %1785 = vset.pattern.permute.xlu0 7
    %1786 = vperm.xlu0 %1785, %v965
    %v1787 = vpop.permute.xlu0 %1786
    %1788 = vset.pattern.permute.xlu0 7
    %1789 = vperm.xlu0 %1788, %v966
    %v1790 = vpop.permute.xlu0 %1789
    %1791 = vset.pattern.permute.xlu0 7
    %1792 = vperm.xlu0 %1791, %v967
    %v1793 = vpop.permute.xlu0 %1792
    %1794 = vset.pattern.permute.xlu0 7
    %1795 = vperm.xlu0 %1794, %v968
    %v1796 = vpop.permute.xlu0 %1795
    %1797 = vset.pattern.permute.xlu0 7
    %1798 = vperm.xlu0 %1797, %v969
    %v1799 = vpop.permute.xlu0 %1798
    %1800 = vset.pattern.permute.xlu0 7
    %1801 = vperm.xlu0 %1800, %v970
    %v1802 = vpop.permute.xlu0 %1801
    %vm1803 = vcmp.eq.s32.totalorder %v1757, %v26
    %vm1804 = vcmp.eq.s32.totalorder %v1760, %v26
    %vm1805 = vcmp.eq.s32.totalorder %v1763, %v26
    %vm1806 = vcmp.eq.s32.totalorder %v1766, %v26
    %vm1807 = vcmp.eq.s32.totalorder %v1769, %v26
    %vm1808 = vcmp.eq.s32.totalorder %v1772, %v26
    %vm1809 = vcmp.eq.s32.totalorder %v1775, %v26
    %vm1810 = vcmp.eq.s32.totalorder %v1778, %v26
    %vm1811 = vcmp.eq.s32.totalorder %v1781, %v26
    %vm1812 = vcmp.eq.s32.totalorder %v1784, %v26
    %vm1813 = vcmp.eq.s32.totalorder %v1787, %v26
    %vm1814 = vcmp.eq.s32.totalorder %v1790, %v26
    %vm1815 = vcmp.eq.s32.totalorder %v1793, %v26
    %vm1816 = vcmp.eq.s32.totalorder %v1796, %v26
    %vm1817 = vcmp.eq.s32.totalorder %v1799, %v26
    %vm1818 = vcmp.eq.s32.totalorder %v1802, %v26
    %v1819 = vsel %vm1803, 1, 0
    %v1820 = vsel %vm1804, 1, 0
    %v1821 = vsel %vm1805, 1, 0
    %v1822 = vsel %vm1806, 1, 0
    %v1823 = vsel %vm1807, 1, 0
    %v1824 = vsel %vm1808, 1, 0
    %v1825 = vsel %vm1809, 1, 0
    %v1826 = vsel %vm1810, 1, 0
    %v1827 = vsel %vm1811, 1, 0
    %v1828 = vsel %vm1812, 1, 0
    %v1829 = vsel %vm1813, 1, 0
    %v1830 = vsel %vm1814, 1, 0
    %v1831 = vsel %vm1815, 1, 0
    %v1832 = vsel %vm1816, 1, 0
    %v1833 = vsel %vm1817, 1, 0
    %v1834 = vsel %vm1818, 1, 0
    %v1835 = vcvt.s32.f32 %v1819
    %v1836 = vcvt.s32.f32 %v1820
    %v1837 = vcvt.s32.f32 %v1821
    %v1838 = vcvt.s32.f32 %v1822
    %v1839 = vcvt.s32.f32 %v1823
    %v1840 = vcvt.s32.f32 %v1824
    %v1841 = vcvt.s32.f32 %v1825
    %v1842 = vcvt.s32.f32 %v1826
    %v1843 = vcvt.s32.f32 %v1827
    %v1844 = vcvt.s32.f32 %v1828
    %v1845 = vcvt.s32.f32 %v1829
    %v1846 = vcvt.s32.f32 %v1830
    %v1847 = vcvt.s32.f32 %v1831
    %v1848 = vcvt.s32.f32 %v1832
    %v1849 = vcvt.s32.f32 %v1833
    %v1850 = vcvt.s32.f32 %v1834
    %v1851 = vadd.f32 %v1739, %v1835
    %v1852 = vadd.f32 %v1740, %v1836
    %v1853 = vadd.f32 %v1741, %v1837
    %v1854 = vadd.f32 %v1742, %v1838
    %v1855 = vadd.f32 %v1743, %v1839
    %v1856 = vadd.f32 %v1744, %v1840
    %v1857 = vadd.f32 %v1745, %v1841
    %v1858 = vadd.f32 %v1746, %v1842
    %v1859 = vadd.f32 %v1747, %v1843
    %v1860 = vadd.f32 %v1748, %v1844
    %v1861 = vadd.f32 %v1749, %v1845
    %v1862 = vadd.f32 %v1750, %v1846
    %v1863 = vadd.f32 %v1751, %v1847
    %v1864 = vadd.f32 %v1752, %v1848
    %v1865 = vadd.f32 %v1753, %v1849
    %v1866 = vadd.f32 %v1754, %v1850
    %v1867 = vpack.c.bf16 %v1852, %v1851
    %v1868 = vpack.c.bf16 %v1854, %v1853
    %v1869 = vpack.c.bf16 %v1856, %v1855
    %v1870 = vpack.c.bf16 %v1858, %v1857
    %v1871 = vpack.c.bf16 %v1860, %v1859
    %v1872 = vpack.c.bf16 %v1862, %v1861
    %v1873 = vpack.c.bf16 %v1864, %v1863
    %v1874 = vpack.c.bf16 %v1866, %v1865
    %1875 = vst [vmem:[#allocation2 + $0x40] sm:$0xff] %v1867
    %1876 = vst [vmem:[#allocation2 + $0x48] sm:$0xff] %v1868
    %1877 = vst [vmem:[#allocation2 + $0x50] sm:$0xff] %v1869
    %1878 = vst [vmem:[#allocation2 + $0x58] sm:$0xff] %v1870
    %1879 = vst [vmem:[#allocation2 + $0x60] sm:$0xff] %v1871
    %1880 = vst [vmem:[#allocation2 + $0x68] sm:$0xff] %v1872
    %1881 = vst [vmem:[#allocation2 + $0x70] sm:$0xff] %v1873
    %1882 = vst [vmem:[#allocation2 + $0x78] sm:$0xff] %v1874
    %v1883 = vld [vmem:[#allocation2] sm:$0xff]
    %v1884 = vld [vmem:[#allocation2 + $0x8] sm:$0xff]
    %v1885 = vld [vmem:[#allocation2 + $0x10] sm:$0xff]
    %v1886 = vld [vmem:[#allocation2 + $0x18] sm:$0xff]
    %v1887 = vld [vmem:[#allocation2 + $0x20] sm:$0xff]
    %v1888 = vld [vmem:[#allocation2 + $0x28] sm:$0xff]
    %v1889 = vld [vmem:[#allocation2 + $0x30] sm:$0xff]
    %v1890 = vld [vmem:[#allocation2 + $0x38] sm:$0xff]
    %v1891 = vld [vmem:[#allocation2 + $0x40] sm:$0xff]
    %v1892 = vld [vmem:[#allocation2 + $0x48] sm:$0xff]
    %v1893 = vld [vmem:[#allocation2 + $0x50] sm:$0xff]
    %v1894 = vld [vmem:[#allocation2 + $0x58] sm:$0xff]
    %v1895 = vld [vmem:[#allocation2 + $0x60] sm:$0xff]
    %v1896 = vld [vmem:[#allocation2 + $0x68] sm:$0xff]
    %v1897 = vld [vmem:[#allocation2 + $0x70] sm:$0xff]
    %v1898 = vld [vmem:[#allocation2 + $0x78] sm:$0xff]
    %v1899 = vld [vmem:[%s2] sm:$0xf]
    %v1900 = vld [vmem:[%s2 + $0x4] sm:$0xf]
    %v1901 = vld [vmem:[%s2 + $0x8] sm:$0xf]
    %v1902 = vld [vmem:[%s2 + $0xc] sm:$0xf]
    %v1903 = vld [vmem:[%s2 + $0x10] sm:$0xf]
    %v1904 = vld [vmem:[%s2 + $0x14] sm:$0xf]
    %v1905 = vld [vmem:[%s2 + $0x18] sm:$0xf]
    %v1906 = vld [vmem:[%s2 + $0x1c] sm:$0xf]
    %v1907 = vld [vmem:[%s2 + $0x20] sm:$0xf]
    %v1908 = vld [vmem:[%s2 + $0x24] sm:$0xf]
    %v1909 = vld [vmem:[%s2 + $0x28] sm:$0xf]
    %v1910 = vld [vmem:[%s2 + $0x2c] sm:$0xf]
    %v1911 = vld [vmem:[%s2 + $0x30] sm:$0xf]
    %v1912 = vld [vmem:[%s2 + $0x34] sm:$0xf]
    %v1913 = vld [vmem:[%s2 + $0x38] sm:$0xf]
    %v1914 = vld [vmem:[%s2 + $0x3c] sm:$0xf]
    %v1931 = vunpack.c.l.b16 %v1899
    %v1932 = vunpack.c.l.b16 %v1900
    %v1933 = vunpack.c.l.b16 %v1901
    %v1934 = vunpack.c.l.b16 %v1902
    %v1935 = vunpack.c.l.b16 %v1903
    %v1936 = vunpack.c.l.b16 %v1904
    %v1937 = vunpack.c.l.b16 %v1905
    %v1938 = vunpack.c.l.b16 %v1906
    %v1939 = vunpack.c.l.b16 %v1907
    %v1940 = vunpack.c.l.b16 %v1908
    %v1941 = vunpack.c.l.b16 %v1909
    %v1942 = vunpack.c.l.b16 %v1910
    %v1943 = vunpack.c.l.b16 %v1911
    %v1944 = vunpack.c.l.b16 %v1912
    %v1945 = vunpack.c.l.b16 %v1913
    %v1946 = vunpack.c.l.b16 %v1914
    %v1947 = vpack.c.b16 %v1932, %v1931
    %v1948 = vpack.c.b16 %v1934, %v1933
    %v1949 = vpack.c.b16 %v1936, %v1935
    %v1950 = vpack.c.b16 %v1938, %v1937
    %v1951 = vpack.c.b16 %v1940, %v1939
    %v1952 = vpack.c.b16 %v1942, %v1941
    %v1953 = vpack.c.b16 %v1944, %v1943
    %v1954 = vpack.c.b16 %v1946, %v1945
    %1963 = vmatprep.subr.bf16.mxu0 0
    %1964 = vmatpush1.bf16.msra.mxu0 %v1947
    %1965 = vmatprep.subr.bf16.mxu0 0
    %1966 = vmatpush1.bf16.msra.mxu0 %v1948
    %1967 = vmatprep.subr.bf16.mxu0 0
    %1968 = vmatpush1.bf16.msra.mxu0 %v1949
    %1969 = vmatprep.subr.bf16.mxu0 0
    %1970 = vmatpush1.bf16.msra.mxu0 %v1950
    %1971 = vmatprep.subr.bf16.mxu0 0
    %1972 = vmatpush1.bf16.msra.mxu0 %v1951
    %1973 = vmatprep.subr.bf16.mxu0 0
    %1974 = vmatpush1.bf16.msra.mxu0 %v1952
    %1975 = vmatprep.subr.bf16.mxu0 0
    %1976 = vmatpush1.bf16.msra.mxu0 %v1953
    %1977 = vmatprep.subr.bf16.mxu0 0
    %1978 = vmatpush1.bf16.msra.mxu0 %v1954
    %1979 = vmatprep.subr.bf16.mxu0 0
    %1980 = vmatpush1.bf16.msra.mxu0 0
    %1981 = vmatprep.subr.bf16.mxu0 0
    %1982 = vmatpush1.bf16.msra.mxu0 0
    %1983 = vmatprep.subr.bf16.mxu0 0
    %1984 = vmatpush1.bf16.msra.mxu0 0
    %1985 = vmatprep.subr.bf16.mxu0 0
    %1986 = vmatpush1.bf16.msra.mxu0 0
    %1987 = vmatprep.subr.bf16.mxu0 0
    %1988 = vmatpush1.bf16.msra.mxu0 0
    %1989 = vmatprep.subr.bf16.mxu0 0
    %1990 = vmatpush1.bf16.msra.mxu0 0
    %1991 = vmatprep.subr.bf16.mxu0 0
    %1992 = vmatpush1.bf16.msra.mxu0 0
    %1993 = vmatprep.subr.bf16.mxu0 0
    %1994 = vmatpush1.bf16.msra.mxu0 0
    %1995 = vmatprep.mubr.bf16.mxu0 0
    %1996 = vmatmul.mubr.bf16.gmra.mrb[0].mxu0 %v1883
    %v1997 = vpop.f32.mrb[0].mxu0
    %v1998 = vadd.f32 0.0, %v1997
    %v1999 = vpop.f32.mrb[0].mxu0
    %v2000 = vpop.f32.mrb[0].mxu0
    %v2001 = vadd.f32 0.0, %v2000
    %v2002 = vpop.f32.mrb[0].mxu0
    %2003 = vmatprep.mubr.bf16.mxu0 0
    %2004 = vmatmul.mubr.bf16.gmra.mrb[0].mxu0 %v1884
    %v2005 = vpop.f32.mrb[0].mxu0
    %v2006 = vadd.f32 0.0, %v2005
    %v2007 = vpop.f32.mrb[0].mxu0
    %v2008 = vpop.f32.mrb[0].mxu0
    %v2009 = vadd.f32 0.0, %v2008
    %v2010 = vpop.f32.mrb[0].mxu0
    %2011 = vmatprep.mubr.bf16.mxu0 0
    %2012 = vmatmul.mubr.bf16.gmra.mrb[0].mxu0 %v1885
    %v2013 = vpop.f32.mrb[0].mxu0
    %v2014 = vadd.f32 0.0, %v2013
    %v2015 = vpop.f32.mrb[0].mxu0
    %v2016 = vpop.f32.mrb[0].mxu0
    %v2017 = vadd.f32 0.0, %v2016
    %v2018 = vpop.f32.mrb[0].mxu0
    %2019 = vmatprep.mubr.bf16.mxu0 0
    %2020 = vmatmul.mubr.bf16.gmra.mrb[0].mxu0 %v1886
    %v2021 = vpop.f32.mrb[0].mxu0
    %v2022 = vadd.f32 0.0, %v2021
    %v2023 = vpop.f32.mrb[0].mxu0
    %v2024 = vpop.f32.mrb[0].mxu0
    %v2025 = vadd.f32 0.0, %v2024
    %v2026 = vpop.f32.mrb[0].mxu0
    %2027 = vmatprep.mubr.bf16.mxu0 0
    %2028 = vmatmul.mubr.bf16.gmra.mrb[0].mxu0 %v1887
    %v2029 = vpop.f32.mrb[0].mxu0
    %v2030 = vadd.f32 0.0, %v2029
    %v2031 = vpop.f32.mrb[0].mxu0
    %v2032 = vpop.f32.mrb[0].mxu0
    %v2033 = vadd.f32 0.0, %v2032
    %v2034 = vpop.f32.mrb[0].mxu0
    %2035 = vmatprep.mubr.bf16.mxu0 0
    %2036 = vmatmul.mubr.bf16.gmra.mrb[0].mxu0 %v1888
    %v2037 = vpop.f32.mrb[0].mxu0
    %v2038 = vadd.f32 0.0, %v2037
    %v2039 = vpop.f32.mrb[0].mxu0
    %v2040 = vpop.f32.mrb[0].mxu0
    %v2041 = vadd.f32 0.0, %v2040
    %v2042 = vpop.f32.mrb[0].mxu0
    %2043 = vmatprep.mubr.bf16.mxu0 0
    %2044 = vmatmul.mubr.bf16.gmra.mrb[0].mxu0 %v1889
    %v2045 = vpop.f32.mrb[0].mxu0
    %v2046 = vadd.f32 0.0, %v2045
    %v2047 = vpop.f32.mrb[0].mxu0
    %v2048 = vpop.f32.mrb[0].mxu0
    %v2049 = vadd.f32 0.0, %v2048
    %v2050 = vpop.f32.mrb[0].mxu0
    %2051 = vmatprep.mubr.bf16.mxu0 0
    %2052 = vmatmul.mubr.bf16.gmra.mrb[0].mxu0 %v1890
    %v2053 = vpop.f32.mrb[0].mxu0
    %v2054 = vadd.f32 0.0, %v2053
    %v2055 = vpop.f32.mrb[0].mxu0
    %v2056 = vpop.f32.mrb[0].mxu0
    %v2057 = vadd.f32 0.0, %v2056
    %v2058 = vpop.f32.mrb[0].mxu0
    %2059 = vmatprep.mubr.bf16.mxu0 0
    %2060 = vmatmul.mubr.bf16.gmra.mrb[0].mxu0 %v1891
    %v2061 = vpop.f32.mrb[0].mxu0
    %v2062 = vadd.f32 0.0, %v2061
    %v2063 = vpop.f32.mrb[0].mxu0
    %v2064 = vpop.f32.mrb[0].mxu0
    %v2065 = vadd.f32 0.0, %v2064
    %v2066 = vpop.f32.mrb[0].mxu0
    %2067 = vmatprep.mubr.bf16.mxu0 0
    %2068 = vmatmul.mubr.bf16.gmra.mrb[0].mxu0 %v1892
    %v2069 = vpop.f32.mrb[0].mxu0
    %v2070 = vadd.f32 0.0, %v2069
    %v2071 = vpop.f32.mrb[0].mxu0
    %v2072 = vpop.f32.mrb[0].mxu0
    %v2073 = vadd.f32 0.0, %v2072
    %v2074 = vpop.f32.mrb[0].mxu0
    %2075 = vmatprep.mubr.bf16.mxu0 0
    %2076 = vmatmul.mubr.bf16.gmra.mrb[0].mxu0 %v1893
    %v2077 = vpop.f32.mrb[0].mxu0
    %v2078 = vadd.f32 0.0, %v2077
    %v2079 = vpop.f32.mrb[0].mxu0
    %v2080 = vpop.f32.mrb[0].mxu0
    %v2081 = vadd.f32 0.0, %v2080
    %v2082 = vpop.f32.mrb[0].mxu0
    %2083 = vmatprep.mubr.bf16.mxu0 0
    %2084 = vmatmul.mubr.bf16.gmra.mrb[0].mxu0 %v1894
    %v2085 = vpop.f32.mrb[0].mxu0
    %v2086 = vadd.f32 0.0, %v2085
    %v2087 = vpop.f32.mrb[0].mxu0
    %v2088 = vpop.f32.mrb[0].mxu0
    %v2089 = vadd.f32 0.0, %v2088
    %v2090 = vpop.f32.mrb[0].mxu0
    %2091 = vmatprep.mubr.bf16.mxu0 0
    %2092 = vmatmul.mubr.bf16.gmra.mrb[0].mxu0 %v1895
    %v2093 = vpop.f32.mrb[0].mxu0
    %v2094 = vadd.f32 0.0, %v2093
    %v2095 = vpop.f32.mrb[0].mxu0
    %v2096 = vpop.f32.mrb[0].mxu0
    %v2097 = vadd.f32 0.0, %v2096
    %v2098 = vpop.f32.mrb[0].mxu0
    %2099 = vmatprep.mubr.bf16.mxu0 0
    %2100 = vmatmul.mubr.bf16.gmra.mrb[0].mxu0 %v1896
    %v2101 = vpop.f32.mrb[0].mxu0
    %v2102 = vadd.f32 0.0, %v2101
    %v2103 = vpop.f32.mrb[0].mxu0
    %v2104 = vpop.f32.mrb[0].mxu0
    %v2105 = vadd.f32 0.0, %v2104
    %v2106 = vpop.f32.mrb[0].mxu0
    %2107 = vmatprep.mubr.bf16.mxu0 0
    %2108 = vmatmul.mubr.bf16.gmra.mrb[0].mxu0 %v1897
    %v2109 = vpop.f32.mrb[0].mxu0
    %v2110 = vadd.f32 0.0, %v2109
    %v2111 = vpop.f32.mrb[0].mxu0
    %v2112 = vpop.f32.mrb[0].mxu0
    %v2113 = vadd.f32 0.0, %v2112
    %v2114 = vpop.f32.mrb[0].mxu0
    %2115 = vmatprep.mubr.bf16.mxu0 0
    %2116 = vmatmul.mubr.bf16.gmra.mrb[0].mxu0 %v1898
    %v2117 = vpop.f32.mrb[0].mxu0
    %v2118 = vadd.f32 0.0, %v2117
    %v2119 = vpop.f32.mrb[0].mxu0
    %v2120 = vpop.f32.mrb[0].mxu0
    %v2121 = vadd.f32 0.0, %v2120
    %v2122 = vpop.f32.mrb[0].mxu0
    %2123 = vdwg.mxu0
    %v2124 = vpack.c.bf16 %v2001, %v1998
    %v2125 = vpack.c.bf16 %v2009, %v2006
    %v2126 = vpack.c.bf16 %v2017, %v2014
    %v2127 = vpack.c.bf16 %v2025, %v2022
    %v2128 = vpack.c.bf16 %v2033, %v2030
    %v2129 = vpack.c.bf16 %v2041, %v2038
    %v2130 = vpack.c.bf16 %v2049, %v2046
    %v2131 = vpack.c.bf16 %v2057, %v2054
    %v2132 = vpack.c.bf16 %v2065, %v2062
    %v2133 = vpack.c.bf16 %v2073, %v2070
    %v2134 = vpack.c.bf16 %v2081, %v2078
    %v2135 = vpack.c.bf16 %v2089, %v2086
    %v2136 = vpack.c.bf16 %v2097, %v2094
    %v2137 = vpack.c.bf16 %v2105, %v2102
    %v2138 = vpack.c.bf16 %v2113, %v2110
    %v2139 = vpack.c.bf16 %v2121, %v2118
    %v2140 = vld [vmem:[%s3] sm:$0xf]
    %v2141 = vld [vmem:[%s3 + $0x4] sm:$0xf]
    %v2142 = vld [vmem:[%s3 + $0x8] sm:$0xf]
    %v2143 = vld [vmem:[%s3 + $0xc] sm:$0xf]
    %v2144 = vld [vmem:[%s3 + $0x10] sm:$0xf]
    %v2145 = vld [vmem:[%s3 + $0x14] sm:$0xf]
    %v2146 = vld [vmem:[%s3 + $0x18] sm:$0xf]
    %v2147 = vld [vmem:[%s3 + $0x1c] sm:$0xf]
    %v2148 = vld [vmem:[%s3 + $0x20] sm:$0xf]
    %v2149 = vld [vmem:[%s3 + $0x24] sm:$0xf]
    %v2150 = vld [vmem:[%s3 + $0x28] sm:$0xf]
    %v2151 = vld [vmem:[%s3 + $0x2c] sm:$0xf]
    %v2152 = vld [vmem:[%s3 + $0x30] sm:$0xf]
    %v2153 = vld [vmem:[%s3 + $0x34] sm:$0xf]
    %v2154 = vld [vmem:[%s3 + $0x38] sm:$0xf]
    %v2155 = vld [vmem:[%s3 + $0x3c] sm:$0xf]
    %v2156 = vld [vmem:[%s4] sm:$0xf]
    %v2157 = vld [vmem:[%s4 + $0x4] sm:$0xf]
    %v2158 = vld [vmem:[%s4 + $0x8] sm:$0xf]
    %v2159 = vld [vmem:[%s4 + $0xc] sm:$0xf]
    %v2160 = vld [vmem:[%s4 + $0x10] sm:$0xf]
    %v2161 = vld [vmem:[%s4 + $0x14] sm:$0xf]
    %v2162 = vld [vmem:[%s4 + $0x18] sm:$0xf]
    %v2163 = vld [vmem:[%s4 + $0x1c] sm:$0xf]
    %v2164 = vld [vmem:[%s4 + $0x20] sm:$0xf]
    %v2165 = vld [vmem:[%s4 + $0x24] sm:$0xf]
    %v2166 = vld [vmem:[%s4 + $0x28] sm:$0xf]
    %v2167 = vld [vmem:[%s4 + $0x2c] sm:$0xf]
    %v2168 = vld [vmem:[%s4 + $0x30] sm:$0xf]
    %v2169 = vld [vmem:[%s4 + $0x34] sm:$0xf]
    %v2170 = vld [vmem:[%s4 + $0x38] sm:$0xf]
    %v2171 = vld [vmem:[%s4 + $0x3c] sm:$0xf]
    %v2188 = vunpack.c.l.b16 %v2156
    %v2189 = vunpack.c.l.b16 %v2157
    %v2190 = vunpack.c.l.b16 %v2158
    %v2191 = vunpack.c.l.b16 %v2159
    %v2192 = vunpack.c.l.b16 %v2160
    %v2193 = vunpack.c.l.b16 %v2161
    %v2194 = vunpack.c.l.b16 %v2162
    %v2195 = vunpack.c.l.b16 %v2163
    %v2196 = vunpack.c.l.b16 %v2164
    %v2197 = vunpack.c.l.b16 %v2165
    %v2198 = vunpack.c.l.b16 %v2166
    %v2199 = vunpack.c.l.b16 %v2167
    %v2200 = vunpack.c.l.b16 %v2168
    %v2201 = vunpack.c.l.b16 %v2169
    %v2202 = vunpack.c.l.b16 %v2170
    %v2203 = vunpack.c.l.b16 %v2171
    %v2204 = vpack.c.b16 %v2189, %v2188
    %v2205 = vpack.c.b16 %v2191, %v2190
    %v2206 = vpack.c.b16 %v2193, %v2192
    %v2207 = vpack.c.b16 %v2195, %v2194
    %v2208 = vpack.c.b16 %v2197, %v2196
    %v2209 = vpack.c.b16 %v2199, %v2198
    %v2210 = vpack.c.b16 %v2201, %v2200
    %v2211 = vpack.c.b16 %v2203, %v2202
    %2220 = vmatprep.subr.bf16.mxu0 0
    %2221 = vmatpush1.bf16.msra.mxu0 %v2204
    %2222 = vmatprep.subr.bf16.mxu0 0
    %2223 = vmatpush1.bf16.msra.mxu0 %v2205
    %2224 = vmatprep.subr.bf16.mxu0 0
    %2225 = vmatpush1.bf16.msra.mxu0 %v2206
    %2226 = vmatprep.subr.bf16.mxu0 0
    %2227 = vmatpush1.bf16.msra.mxu0 %v2207
    %2228 = vmatprep.subr.bf16.mxu0 0
    %2229 = vmatpush1.bf16.msra.mxu0 %v2208
    %2230 = vmatprep.subr.bf16.mxu0 0
    %2231 = vmatpush1.bf16.msra.mxu0 %v2209
    %2232 = vmatprep.subr.bf16.mxu0 0
    %2233 = vmatpush1.bf16.msra.mxu0 %v2210
    %2234 = vmatprep.subr.bf16.mxu0 0
    %2235 = vmatpush1.bf16.msra.mxu0 %v2211
    %2236 = vmatprep.subr.bf16.mxu0 0
    %2237 = vmatpush1.bf16.msra.mxu0 0
    %2238 = vmatprep.subr.bf16.mxu0 0
    %2239 = vmatpush1.bf16.msra.mxu0 0
    %2240 = vmatprep.subr.bf16.mxu0 0
    %2241 = vmatpush1.bf16.msra.mxu0 0
    %2242 = vmatprep.subr.bf16.mxu0 0
    %2243 = vmatpush1.bf16.msra.mxu0 0
    %2244 = vmatprep.subr.bf16.mxu0 0
    %2245 = vmatpush1.bf16.msra.mxu0 0
    %2246 = vmatprep.subr.bf16.mxu0 0
    %2247 = vmatpush1.bf16.msra.mxu0 0
    %2248 = vmatprep.subr.bf16.mxu0 0
    %2249 = vmatpush1.bf16.msra.mxu0 0
    %2250 = vmatprep.subr.bf16.mxu0 0
    %2251 = vmatpush1.bf16.msra.mxu0 0
    %2252 = vmatprep.mubr.bf16.mxu0 0
    %2253 = vmatmul.mubr.bf16.gmra.mrb[0].mxu0 %v2132
    %v2254 = vpop.f32.mrb[0].mxu0
    %v2255 = vadd.f32 0.0, %v2254
    %v2256 = vpop.f32.mrb[0].mxu0
    %v2257 = vpop.f32.mrb[0].mxu0
    %v2258 = vadd.f32 0.0, %v2257
    %v2259 = vpop.f32.mrb[0].mxu0
    %2260 = vmatprep.mubr.bf16.mxu0 0
    %2261 = vmatmul.mubr.bf16.gmra.mrb[0].mxu0 %v2133
    %v2262 = vpop.f32.mrb[0].mxu0
    %v2263 = vadd.f32 0.0, %v2262
    %v2264 = vpop.f32.mrb[0].mxu0
    %v2265 = vpop.f32.mrb[0].mxu0
    %v2266 = vadd.f32 0.0, %v2265
    %v2267 = vpop.f32.mrb[0].mxu0
    %2268 = vmatprep.mubr.bf16.mxu0 0
    %2269 = vmatmul.mubr.bf16.gmra.mrb[0].mxu0 %v2134
    %v2270 = vpop.f32.mrb[0].mxu0
    %v2271 = vadd.f32 0.0, %v2270
    %v2272 = vpop.f32.mrb[0].mxu0
    %v2273 = vpop.f32.mrb[0].mxu0
    %v2274 = vadd.f32 0.0, %v2273
    %v2275 = vpop.f32.mrb[0].mxu0
    %2276 = vmatprep.mubr.bf16.mxu0 0
    %2277 = vmatmul.mubr.bf16.gmra.mrb[0].mxu0 %v2135
    %v2278 = vpop.f32.mrb[0].mxu0
    %v2279 = vadd.f32 0.0, %v2278
    %v2280 = vpop.f32.mrb[0].mxu0
    %v2281 = vpop.f32.mrb[0].mxu0
    %v2282 = vadd.f32 0.0, %v2281
    %v2283 = vpop.f32.mrb[0].mxu0
    %2284 = vmatprep.mubr.bf16.mxu0 0
    %2285 = vmatmul.mubr.bf16.gmra.mrb[0].mxu0 %v2136
    %v2286 = vpop.f32.mrb[0].mxu0
    %v2287 = vadd.f32 0.0, %v2286
    %v2288 = vpop.f32.mrb[0].mxu0
    %v2289 = vpop.f32.mrb[0].mxu0
    %v2290 = vadd.f32 0.0, %v2289
    %v2291 = vpop.f32.mrb[0].mxu0
    %2292 = vmatprep.mubr.bf16.mxu0 0
    %2293 = vmatmul.mubr.bf16.gmra.mrb[0].mxu0 %v2137
    %v2294 = vpop.f32.mrb[0].mxu0
    %v2295 = vadd.f32 0.0, %v2294
    %v2296 = vpop.f32.mrb[0].mxu0
    %v2297 = vpop.f32.mrb[0].mxu0
    %v2298 = vadd.f32 0.0, %v2297
    %v2299 = vpop.f32.mrb[0].mxu0
    %2300 = vmatprep.mubr.bf16.mxu0 0
    %2301 = vmatmul.mubr.bf16.gmra.mrb[0].mxu0 %v2138
    %v2302 = vpop.f32.mrb[0].mxu0
    %v2303 = vadd.f32 0.0, %v2302
    %v2304 = vpop.f32.mrb[0].mxu0
    %v2305 = vpop.f32.mrb[0].mxu0
    %v2306 = vadd.f32 0.0, %v2305
    %v2307 = vpop.f32.mrb[0].mxu0
    %2308 = vmatprep.mubr.bf16.mxu0 0
    %2309 = vmatmul.mubr.bf16.gmra.mrb[0].mxu0 %v2139
    %v2310 = vpop.f32.mrb[0].mxu0
    %v2311 = vadd.f32 0.0, %v2310
    %v2312 = vpop.f32.mrb[0].mxu0
    %v2313 = vpop.f32.mrb[0].mxu0
    %v2314 = vadd.f32 0.0, %v2313
    %v2315 = vpop.f32.mrb[0].mxu0
    %2316 = vdwg.mxu0
    %v2333 = vunpack.c.l.b16 %v2140
    %v2334 = vunpack.c.l.b16 %v2141
    %v2335 = vunpack.c.l.b16 %v2142
    %v2336 = vunpack.c.l.b16 %v2143
    %v2337 = vunpack.c.l.b16 %v2144
    %v2338 = vunpack.c.l.b16 %v2145
    %v2339 = vunpack.c.l.b16 %v2146
    %v2340 = vunpack.c.l.b16 %v2147
    %v2341 = vunpack.c.l.b16 %v2148
    %v2342 = vunpack.c.l.b16 %v2149
    %v2343 = vunpack.c.l.b16 %v2150
    %v2344 = vunpack.c.l.b16 %v2151
    %v2345 = vunpack.c.l.b16 %v2152
    %v2346 = vunpack.c.l.b16 %v2153
    %v2347 = vunpack.c.l.b16 %v2154
    %v2348 = vunpack.c.l.b16 %v2155
    %v2349 = vpack.c.b16 %v2334, %v2333
    %v2350 = vpack.c.b16 %v2336, %v2335
    %v2351 = vpack.c.b16 %v2338, %v2337
    %v2352 = vpack.c.b16 %v2340, %v2339
    %v2353 = vpack.c.b16 %v2342, %v2341
    %v2354 = vpack.c.b16 %v2344, %v2343
    %v2355 = vpack.c.b16 %v2346, %v2345
    %v2356 = vpack.c.b16 %v2348, %v2347
    %2365 = vmatprep.subr.bf16.mxu0 0
    %2366 = vmatpush1.bf16.msra.mxu0 %v2349
    %2367 = vmatprep.subr.bf16.mxu0 0
    %2368 = vmatpush1.bf16.msra.mxu0 %v2350
    %2369 = vmatprep.subr.bf16.mxu0 0
    %2370 = vmatpush1.bf16.msra.mxu0 %v2351
    %2371 = vmatprep.subr.bf16.mxu0 0
    %2372 = vmatpush1.bf16.msra.mxu0 %v2352
    %2373 = vmatprep.subr.bf16.mxu0 0
    %2374 = vmatpush1.bf16.msra.mxu0 %v2353
    %2375 = vmatprep.subr.bf16.mxu0 0
    %2376 = vmatpush1.bf16.msra.mxu0 %v2354
    %2377 = vmatprep.subr.bf16.mxu0 0
    %2378 = vmatpush1.bf16.msra.mxu0 %v2355
    %2379 = vmatprep.subr.bf16.mxu0 0
    %2380 = vmatpush1.bf16.msra.mxu0 %v2356
    %2381 = vmatprep.subr.bf16.mxu0 0
    %2382 = vmatpush1.bf16.msra.mxu0 0
    %2383 = vmatprep.subr.bf16.mxu0 0
    %2384 = vmatpush1.bf16.msra.mxu0 0
    %2385 = vmatprep.subr.bf16.mxu0 0
    %2386 = vmatpush1.bf16.msra.mxu0 0
    %2387 = vmatprep.subr.bf16.mxu0 0
    %2388 = vmatpush1.bf16.msra.mxu0 0
    %2389 = vmatprep.subr.bf16.mxu0 0
    %2390 = vmatpush1.bf16.msra.mxu0 0
    %2391 = vmatprep.subr.bf16.mxu0 0
    %2392 = vmatpush1.bf16.msra.mxu0 0
    %2393 = vmatprep.subr.bf16.mxu0 0
    %2394 = vmatpush1.bf16.msra.mxu0 0
    %2395 = vmatprep.subr.bf16.mxu0 0
    %2396 = vmatpush1.bf16.msra.mxu0 0
    %2397 = vmatprep.mubr.bf16.mxu0 0
    %2398 = vmatmul.mubr.bf16.gmra.mrb[0].mxu0 %v2124
    %v2399 = vpop.f32.mrb[0].mxu0
    %v2400 = vadd.f32 %v2255, %v2399
    %v2401 = vpop.f32.mrb[0].mxu0
    %v2402 = vpop.f32.mrb[0].mxu0
    %v2403 = vadd.f32 %v2258, %v2402
    %v2404 = vpop.f32.mrb[0].mxu0
    %2405 = vmatprep.mubr.bf16.mxu0 0
    %2406 = vmatmul.mubr.bf16.gmra.mrb[0].mxu0 %v2125
    %v2407 = vpop.f32.mrb[0].mxu0
    %v2408 = vadd.f32 %v2263, %v2407
    %v2409 = vpop.f32.mrb[0].mxu0
    %v2410 = vpop.f32.mrb[0].mxu0
    %v2411 = vadd.f32 %v2266, %v2410
    %v2412 = vpop.f32.mrb[0].mxu0
    %2413 = vmatprep.mubr.bf16.mxu0 0
    %2414 = vmatmul.mubr.bf16.gmra.mrb[0].mxu0 %v2126
    %v2415 = vpop.f32.mrb[0].mxu0
    %v2416 = vadd.f32 %v2271, %v2415
    %v2417 = vpop.f32.mrb[0].mxu0
    %v2418 = vpop.f32.mrb[0].mxu0
    %v2419 = vadd.f32 %v2274, %v2418
    %v2420 = vpop.f32.mrb[0].mxu0
    %2421 = vmatprep.mubr.bf16.mxu0 0
    %2422 = vmatmul.mubr.bf16.gmra.mrb[0].mxu0 %v2127
    %v2423 = vpop.f32.mrb[0].mxu0
    %v2424 = vadd.f32 %v2279, %v2423
    %v2425 = vpop.f32.mrb[0].mxu0
    %v2426 = vpop.f32.mrb[0].mxu0
    %v2427 = vadd.f32 %v2282, %v2426
    %v2428 = vpop.f32.mrb[0].mxu0
    %2429 = vmatprep.mubr.bf16.mxu0 0
    %2430 = vmatmul.mubr.bf16.gmra.mrb[0].mxu0 %v2128
    %v2431 = vpop.f32.mrb[0].mxu0
    %v2432 = vadd.f32 %v2287, %v2431
    %v2433 = vpop.f32.mrb[0].mxu0
    %v2434 = vpop.f32.mrb[0].mxu0
    %v2435 = vadd.f32 %v2290, %v2434
    %v2436 = vpop.f32.mrb[0].mxu0
    %2437 = vmatprep.mubr.bf16.mxu0 0
    %2438 = vmatmul.mubr.bf16.gmra.mrb[0].mxu0 %v2129
    %v2439 = vpop.f32.mrb[0].mxu0
    %v2440 = vadd.f32 %v2295, %v2439
    %v2441 = vpop.f32.mrb[0].mxu0
    %v2442 = vpop.f32.mrb[0].mxu0
    %v2443 = vadd.f32 %v2298, %v2442
    %v2444 = vpop.f32.mrb[0].mxu0
    %2445 = vmatprep.mubr.bf16.mxu0 0
    %2446 = vmatmul.mubr.bf16.gmra.mrb[0].mxu0 %v2130
    %v2447 = vpop.f32.mrb[0].mxu0
    %v2448 = vadd.f32 %v2303, %v2447
    %v2449 = vpop.f32.mrb[0].mxu0
    %v2450 = vpop.f32.mrb[0].mxu0
    %v2451 = vadd.f32 %v2306, %v2450
    %v2452 = vpop.f32.mrb[0].mxu0
    %2453 = vmatprep.mubr.bf16.mxu0 0
    %2454 = vmatmul.mubr.bf16.gmra.mrb[0].mxu0 %v2131
    %v2455 = vpop.f32.mrb[0].mxu0
    %v2456 = vadd.f32 %v2311, %v2455
    %v2457 = vpop.f32.mrb[0].mxu0
    %v2458 = vpop.f32.mrb[0].mxu0
    %v2459 = vadd.f32 %v2314, %v2458
    %v2460 = vpop.f32.mrb[0].mxu0
    %2461 = vdwg.mxu0
    %v2462 = vld [vmem:[%s5] sm:$0x1]
    %v2464 = vlaneseq
    %v2465 = vshrl.u32 %v2464, 7
    %v2466 = vsub.s32 0, %v2465
    %v2467 = vrot.slane %v2462, %v2466
    %v2469 = vadd.f32 %v2400, %v2467
    %v2470 = vadd.f32 %v2403, %v2467
    %v2471 = vadd.f32 %v2408, %v2467
    %v2472 = vadd.f32 %v2411, %v2467
    %v2473 = vadd.f32 %v2416, %v2467
    %v2474 = vadd.f32 %v2419, %v2467
    %v2475 = vadd.f32 %v2424, %v2467
    %v2476 = vadd.f32 %v2427, %v2467
    %v2477 = vadd.f32 %v2432, %v2467
    %v2478 = vadd.f32 %v2435, %v2467
    %v2479 = vadd.f32 %v2440, %v2467
    %v2480 = vadd.f32 %v2443, %v2467
    %v2481 = vadd.f32 %v2448, %v2467
    %v2482 = vadd.f32 %v2451, %v2467
    %v2483 = vadd.f32 %v2456, %v2467
    %v2484 = vadd.f32 %v2459, %v2467
    %v2485 = vxor.u32 %v2469, 2147483648
    %v2486 = vxor.u32 %v2470, 2147483648
    %v2487 = vxor.u32 %v2471, 2147483648
    %v2488 = vxor.u32 %v2472, 2147483648
    %v2489 = vxor.u32 %v2473, 2147483648
    %v2490 = vxor.u32 %v2474, 2147483648
    %v2491 = vxor.u32 %v2475, 2147483648
    %v2492 = vxor.u32 %v2476, 2147483648
    %v2493 = vxor.u32 %v2477, 2147483648
    %v2494 = vxor.u32 %v2478, 2147483648
    %v2495 = vxor.u32 %v2479, 2147483648
    %v2496 = vxor.u32 %v2480, 2147483648
    %v2497 = vxor.u32 %v2481, 2147483648
    %v2498 = vxor.u32 %v2482, 2147483648
    %v2499 = vxor.u32 %v2483, 2147483648
    %v2500 = vxor.u32 %v2484, 2147483648
    %v2501 = vmul.f32 %v2485, 1.442695
    %v2502 = vpow.pop %v2501
    %v2503 = vmul.f32 %v2486, 1.442695
    %v2504 = vpow.pop %v2503
    %v2505 = vmul.f32 %v2487, 1.442695
    %v2506 = vpow.pop %v2505
    %v2507 = vmul.f32 %v2488, 1.442695
    %v2508 = vpow.pop %v2507
    %v2509 = vmul.f32 %v2489, 1.442695
    %v2510 = vpow.pop %v2509
    %v2511 = vmul.f32 %v2490, 1.442695
    %v2512 = vpow.pop %v2511
    %v2513 = vmul.f32 %v2491, 1.442695
    %v2514 = vpow.pop %v2513
    %v2515 = vmul.f32 %v2492, 1.442695
    %v2516 = vpow.pop %v2515
    %v2517 = vmul.f32 %v2493, 1.442695
    %v2518 = vpow.pop %v2517
    %v2519 = vmul.f32 %v2494, 1.442695
    %v2520 = vpow.pop %v2519
    %v2521 = vmul.f32 %v2495, 1.442695
    %v2522 = vpow.pop %v2521
    %v2523 = vmul.f32 %v2496, 1.442695
    %v2524 = vpow.pop %v2523
    %v2525 = vmul.f32 %v2497, 1.442695
    %v2526 = vpow.pop %v2525
    %v2527 = vmul.f32 %v2498, 1.442695
    %v2528 = vpow.pop %v2527
    %v2529 = vmul.f32 %v2499, 1.442695
    %v2530 = vpow.pop %v2529
    %v2531 = vmul.f32 %v2500, 1.442695
    %v2532 = vpow.pop %v2531
    %v2533 = vadd.f32 %v2502, 1.0
    %v2534 = vadd.f32 %v2504, 1.0
    %v2535 = vadd.f32 %v2506, 1.0
    %v2536 = vadd.f32 %v2508, 1.0
    %v2537 = vadd.f32 %v2510, 1.0
    %v2538 = vadd.f32 %v2512, 1.0
    %v2539 = vadd.f32 %v2514, 1.0
    %v2540 = vadd.f32 %v2516, 1.0
    %v2541 = vadd.f32 %v2518, 1.0
    %v2542 = vadd.f32 %v2520, 1.0
    %v2543 = vadd.f32 %v2522, 1.0
    %v2544 = vadd.f32 %v2524, 1.0
    %v2545 = vadd.f32 %v2526, 1.0
    %v2546 = vadd.f32 %v2528, 1.0
    %v2547 = vadd.f32 %v2530, 1.0
    %v2548 = vadd.f32 %v2532, 1.0
    %v2549 = vrcp.pop %v2533
    %v2550 = vmul.f32 1.0, %v2549
    %v2551 = vrcp.pop %v2534
    %v2552 = vmul.f32 1.0, %v2551
    %v2553 = vrcp.pop %v2535
    %v2554 = vmul.f32 1.0, %v2553
    %v2555 = vrcp.pop %v2536
    %v2556 = vmul.f32 1.0, %v2555
    %v2557 = vrcp.pop %v2537
    %v2558 = vmul.f32 1.0, %v2557
    %v2559 = vrcp.pop %v2538
    %v2560 = vmul.f32 1.0, %v2559
    %v2561 = vrcp.pop %v2539
    %v2562 = vmul.f32 1.0, %v2561
    %v2563 = vrcp.pop %v2540
    %v2564 = vmul.f32 1.0, %v2563
    %v2565 = vrcp.pop %v2541
    %v2566 = vmul.f32 1.0, %v2565
    %v2567 = vrcp.pop %v2542
    %v2568 = vmul.f32 1.0, %v2567
    %v2569 = vrcp.pop %v2543
    %v2570 = vmul.f32 1.0, %v2569
    %v2571 = vrcp.pop %v2544
    %v2572 = vmul.f32 1.0, %v2571
    %v2573 = vrcp.pop %v2545
    %v2574 = vmul.f32 1.0, %v2573
    %v2575 = vrcp.pop %v2546
    %v2576 = vmul.f32 1.0, %v2575
    %v2577 = vrcp.pop %v2547
    %v2578 = vmul.f32 1.0, %v2577
    %v2579 = vrcp.pop %v2548
    %v2580 = vmul.f32 1.0, %v2579
    %2581 = vst [vmem:[#allocation3] sm:$0xff] %v2550
    %2582 = vst [vmem:[#allocation3 + $0x8] sm:$0xff] %v2552
    %2583 = vst [vmem:[#allocation3 + $0x10] sm:$0xff] %v2554
    %2584 = vst [vmem:[#allocation3 + $0x18] sm:$0xff] %v2556
    %2585 = vst [vmem:[#allocation3 + $0x20] sm:$0xff] %v2558
    %2586 = vst [vmem:[#allocation3 + $0x28] sm:$0xff] %v2560
    %2587 = vst [vmem:[#allocation3 + $0x30] sm:$0xff] %v2562
    %2588 = vst [vmem:[#allocation3 + $0x38] sm:$0xff] %v2564
    %2589 = vst [vmem:[#allocation3 + $0x40] sm:$0xff] %v2566
    %2590 = vst [vmem:[#allocation3 + $0x48] sm:$0xff] %v2568
    %2591 = vst [vmem:[#allocation3 + $0x50] sm:$0xff] %v2570
    %2592 = vst [vmem:[#allocation3 + $0x58] sm:$0xff] %v2572
    %2593 = vst [vmem:[#allocation3 + $0x60] sm:$0xff] %v2574
    %2594 = vst [vmem:[#allocation3 + $0x68] sm:$0xff] %v2576
    %2595 = vst [vmem:[#allocation3 + $0x70] sm:$0xff] %v2578
    %2596 = vst [vmem:[#allocation3 + $0x78] sm:$0xff] %v2580
    // Predicated region
    $region26: #{tpu_custom_call.1} parent=1 // pred_check
      _
    $region27: #{tpu_custom_call.1} parent=1 // pred_check_branch
      %2598 = sbr.rel (0) target = $region29
    $region28: #{tpu_custom_call.1} parent=1 // pred_region
      %s2600 = ssub.s32 2048, 2048
      %2601 = vsyncadd [#allocation4], %s2600
      %s2602 = sshll.u32 [#allocation3], 4
      %s2603 = int_to_ptr.vmem [resolvable:$true] %s2602
      %2608 = dma.vmem_to_hbm [thread:$0]  %s2603, 2048, %s6, [#allocation4], 128, 128, 8
    $region29: #{tpu_custom_call.1} parent=1 // pred_fallthru
      _
    // Predicated region
    $region30: #{tpu_custom_call.1} parent=1 // pred_check
      _
    $region31: #{tpu_custom_call.1} parent=1 // pred_check_branch
      %2610 = sbr.rel (0) target = $region33
    $region32: #{tpu_custom_call.1} parent=1 // pred_region
      %2611 = dma.done [#allocation4], 2048
    $region33: #{tpu_custom_call.1} parent=1 // pred_fallthru
      _
    %2612 = vsyncpa [#allocation4], 1

</llo_original>
